<compile_context>
chip_gen: v6e
topology: v6e:2x2x1
jax: 0.10.0
libtpu: 0.0.40
codegen_flags: <defaults>
</compile_context>

<pallas_src>
import functools

import jax
import jax.numpy as jnp
from jax.experimental import pallas as pl
from jax.experimental.pallas import tpu as pltpu

HP = 128                # lane-dense padded hidden width
BF16 = jnp.bfloat16


def _round_up(n: int, m: int) -> int:
    return (n + m - 1) // m * m


def _pad2(a, rows: int, cols: int):
    r, c = a.shape
    return jnp.pad(a, ((0, rows - r), (0, cols - c)))


# ---------------------------------------------------------------------------
# Kernel 1: hoisted node projection  p = x @ W1a   (row-tiled, parallel grid)
# ---------------------------------------------------------------------------
def _node_proj_kernel(x_ref, w_ref, o_ref):
    o_ref[...] = jnp.dot(x_ref[...], w_ref[...],
                         preferred_element_type=jnp.float32).astype(o_ref.dtype)


def node_proj(x_bf, w_bf, tm):
    n_pad, hp = x_bf.shape
    return pl.pallas_call(
        _node_proj_kernel,
        out_shape=jax.ShapeDtypeStruct((n_pad, hp), BF16),
        grid_spec=pltpu.PrefetchScalarGridSpec(
            num_scalar_prefetch=0,
            grid=(n_pad // tm,),
            in_specs=[pl.BlockSpec((tm, hp), lambda i: (i, 0)),
                      pl.BlockSpec((hp, hp), lambda i: (0, 0))],
            out_specs=pl.BlockSpec((tm, hp), lambda i: (i, 0))),
        compiler_params=pltpu.CompilerParams(dimension_semantics=("parallel",)),
    )(x_bf, w_bf)


# ---------------------------------------------------------------------------
# Kernel 2: hoisted edge messages  msg = relu(p_j + e @ W1b + b1)  -> bf16
# (edge-tiled, parallel grid; computed ONCE, in destination-sorted order)
# ---------------------------------------------------------------------------
def _edge_msg_kernel(pj_ref, e_ref, w_ref, b_ref, o_ref):
    m = jnp.dot(e_ref[...], w_ref[...], preferred_element_type=jnp.float32)
    m = jnp.maximum(m + pj_ref[...].astype(jnp.float32) + b_ref[...], 0.0)
    o_ref[...] = m.astype(o_ref.dtype)


def edge_msg(pj_bf, e_bf, w1b, b1, te):
    e_pad, hp = pj_bf.shape
    return pl.pallas_call(
        _edge_msg_kernel,
        out_shape=jax.ShapeDtypeStruct((e_pad, hp), BF16),
        grid_spec=pltpu.PrefetchScalarGridSpec(
            num_scalar_prefetch=0,
            grid=(e_pad // te,),
            in_specs=[pl.BlockSpec((te, hp), lambda i: (i, 0)),
                      pl.BlockSpec((te, hp), lambda i: (i, 0)),
                      pl.BlockSpec((hp, hp), lambda i: (0, 0)),
                      pl.BlockSpec((1, hp), lambda i: (0, 0))],
            out_specs=pl.BlockSpec((te, hp), lambda i: (i, 0))),
        compiler_params=pltpu.CompilerParams(dimension_semantics=("parallel",)),
    )(pj_bf, e_bf, w1b, b1)


# ---------------------------------------------------------------------------
# Kernel 3: upper-branch messages  msg_up = relu(attr1_flat @ W2 + b2)
# (row-tiled, parallel grid, bf16 out — no whole-array VMEM residency)
# ---------------------------------------------------------------------------
def _upper_msg_kernel(a_ref, w_ref, b_ref, o_ref):
    m = jnp.dot(a_ref[...], w_ref[...], preferred_element_type=jnp.float32)
    o_ref[...] = jnp.maximum(m + b_ref[...], 0.0).astype(o_ref.dtype)


def upper_msg(attr_bf, w2, b2, tr):
    rows_pad, hp = attr_bf.shape
    return pl.pallas_call(
        _upper_msg_kernel,
        out_shape=jax.ShapeDtypeStruct((rows_pad, hp), BF16),
        grid_spec=pltpu.PrefetchScalarGridSpec(
            num_scalar_prefetch=0,
            grid=(rows_pad // tr,),
            in_specs=[pl.BlockSpec((tr, hp), lambda i: (i, 0)),
                      pl.BlockSpec((hp, hp), lambda i: (0, 0)),
                      pl.BlockSpec((1, hp), lambda i: (0, 0))],
            out_specs=pl.BlockSpec((tr, hp), lambda i: (i, 0))),
        compiler_params=pltpu.CompilerParams(dimension_semantics=("parallel",)),
    )(attr_bf, w2, b2)


# ---------------------------------------------------------------------------
# Kernel 4 (fused): schedule-driven scatter-sum + eps updates + combine.
# One flattened grid step = one (node-tile, edge-tile) visit:
#   flag bit0: first visit of this node tile  -> zero f32 accumulator
#   flag bit2: real (non-padding) step        -> acc += onehot(dst) @ msg
#   flag bit1: last visit of this node tile   -> eps updates + K=2*hp combine
# ---------------------------------------------------------------------------
def _fused_node_kernel(node_sref, edge_sref, flag_sref,
                       dst_ref, msg_ref, x_ref, up_ref, eps_ref,
                       w3_ref, b3_ref, w4_ref, b4_ref, w5_ref, b5_ref,
                       o_ref, acc_ref, *, tm, te):
    s = pl.program_id(0)
    flag = flag_sref[s]

    @pl.when((flag & 1) != 0)                      # first step for this node tile
    def _():
        acc_ref[...] = jnp.zeros_like(acc_ref)

    @pl.when((flag & 4) != 0)                      # real (non-padding) step
    def _():
        # In-register one-hot block restricted to the visited edge tile.
        # Padded / out-of-range edges carry dst == n_pad (sentinel) and can
        # never match a node row, so they are never accumulated.
        rows = node_sref[s] * tm + jax.lax.broadcasted_iota(jnp.int32, (tm, te), 0)
        onehot = (rows == dst_ref[...]).astype(BF16)
        acc_ref[...] += jnp.dot(onehot, msg_ref[...],
                                preferred_element_type=jnp.float32)

    @pl.when((flag & 2) != 0)                      # last step for this node tile
    def _():
        eps1 = eps_ref[0]
        eps2 = eps_ref[1]
        x = x_ref[...].astype(jnp.float32)
        h_adj = acc_ref[...] + (1.0 + eps1) * x
        out_adj = jnp.maximum(
            jnp.dot(h_adj.astype(BF16), w3_ref[...],
                    preferred_element_type=jnp.float32) + b3_ref[...], 0.0)
        h_up = up_ref[...].astype(jnp.float32) + (1.0 + eps2) * x
        out_up = jnp.maximum(
            jnp.dot(h_up.astype(BF16), w4_ref[...],
                    preferred_element_type=jnp.float32) + b4_ref[...], 0.0)
        # fused combine: single K = 2*hp matmul fills the 256-wide MXU
        cat = jnp.concatenate([out_adj.astype(BF16), out_up.astype(BF16)], axis=-1)
        o_ref[...] = (jnp.dot(cat, w5_ref[...],
                              preferred_element_type=jnp.float32)
                      + b5_ref[...]).astype(o_ref.dtype)


def fused_node_update(sched_node, sched_edge, sched_flag,
                      dst2d, msg, x_bf, up_bf, eps,
                      w3, b3, w4, b4, w5, b5, *, tm, te):
    n_pad, hp = x_bf.shape
    e_pad = msg.shape[0]
    num_steps = int(sched_node.shape[0])
    nnt = n_pad // tm
    kern = functools.partial(_fused_node_kernel, tm=tm, te=te)

    nspec = pl.BlockSpec((tm, hp), lambda s, n, e, f: (n[s], 0))
    wspec = pl.BlockSpec((hp, hp), lambda s, n, e, f: (0, 0))
    bspec = pl.BlockSpec((1, hp), lambda s, n, e, f: (0, 0))

    flops = (2 * num_steps * tm * te * hp              # one-hot scatter matmuls
             + 2 * nnt * tm * hp * hp * 2              # W3 / W4 epilogue
             + 2 * nnt * tm * (2 * hp) * hp)           # fused combine
    bytes_accessed = (e_pad * hp * 2 + e_pad * 4       # msg + dst
                      + 2 * n_pad * hp * 2             # x + agg_up (bf16)
                      + n_pad * hp * 4                 # out (f32)
                      + 4 * hp * hp * 2 + 4 * hp * 4)  # weights + biases

    return pl.pallas_call(
        kern,
        out_shape=jax.ShapeDtypeStruct((n_pad, hp), jnp.float32),
        grid_spec=pltpu.PrefetchScalarGridSpec(
            num_scalar_prefetch=3,
            grid=(num_steps,),
            in_specs=[pl.BlockSpec((1, te), lambda s, n, e, f: (0, e[s])),   # dst ids
                      pl.BlockSpec((te, hp), lambda s, n, e, f: (e[s], 0)),  # msg tile
                      nspec,                                                 # x
                      nspec,                                                 # agg_up
                      pl.BlockSpec(memory_space=pltpu.MemorySpace.SMEM),     # eps scalars
                      wspec, bspec,                                          # W3, b3
                      wspec, bspec,                                          # W4, b4
                      pl.BlockSpec((2 * hp, hp), lambda s, n, e, f: (0, 0)), # W5 stacked
                      bspec],                                                # b5
            out_specs=nspec,
            scratch_shapes=[pltpu.VMEM((tm, hp), jnp.float32)]),
        compiler_params=pltpu.CompilerParams(
            dimension_semantics=("arbitrary",),
            vmem_limit_bytes=32 * 1024 * 1024),
        cost_estimate=pl.CostEstimate(flops=flops, transcendentals=0,
                                      bytes_accessed=bytes_accessed),
    )(sched_node, sched_edge, sched_flag,
      dst2d, msg, x_bf, up_bf, eps, w3, b3, w4, b4, w5, b5)


# ---------------------------------------------------------------------------
# NConv forward (jit-able JAX glue + Pallas kernels)
# ---------------------------------------------------------------------------
def nconv_forward(params, x, e, edge_index, attr1, nc1, x_idx_b, x_idx_n):
    N, H = x.shape
    E = e.shape[0]
    B, C, _ = attr1.shape

    hp = max(HP, _round_up(H, 128))
    tm = min(512, _round_up(N, 8))          # node-row tile (fused kernel)
    te = min(1024, _round_up(E, 128))       # edge tile (lane-dense dst block)
    n_pad = _round_up(N, tm)
    e_pad = _round_up(E, te)
    nnt = n_pad // tm
    net = e_pad // te

    padw = lambda w: _pad2(w, hp, hp).astype(BF16)
    padb = lambda b: _pad2(b, 1, hp).astype(jnp.float32)

    w1a, w1b, b1 = padw(params["w1a"]), padw(params["w1b"]), padb(params["b1"])
    w2, b2 = padw(params["w2"]), padb(params["b2"])
    w3, b3 = padw(params["w3"]), padb(params["b3"])
    w4, b4 = padw(params["w4"]), padb(params["b4"])
    # combine Linear(2H -> H): stack the two H-row halves at lane-padded offsets
    w5 = params["w5"]
    w5_pad = jnp.zeros((2 * hp, hp), jnp.float32)
    w5_pad = w5_pad.at[:H, :H].set(w5[:H])
    w5_pad = w5_pad.at[hp:hp + H, :H].set(w5[H:])
    w5_bf = w5_pad.astype(BF16)
    b5 = padb(params["b5"])
    eps = jnp.concatenate([params["eps1"], params["eps2"]]).astype(jnp.float32)

    # lane-padded bf16 node features (padded lanes/rows are exactly zero)
    x_lane = _pad2(x, N, hp).astype(BF16)                 # [N, hp]
    x_node = jnp.pad(x_lane, ((0, n_pad - N), (0, 0)))    # [n_pad, hp]

    # ---- hoisted projection p = x @ W1a (gather(x) @ W == gather(x @ W)) ----
    tp = min(1024, _round_up(N, 8))
    n_proj = _round_up(N, tp)
    x_proj = jnp.pad(x_lane, ((0, n_proj - N), (0, 0)))
    p = node_proj(x_proj, w1a, tp)                        # [n_proj, hp] bf16

    # ---- sort edges by destination; single padded-index gathers (no re-pad) --
    # TODO(synk): the data-dependent per-edge gathers (p[src], e[order]) and the
    # per-graph dense nc/x_idx gathers stay in XLA glue.
    src = edge_index[0].astype(jnp.int32)
    dst = edge_index[1].astype(jnp.int32)
    order = jnp.argsort(dst).astype(jnp.int32)
    src_s = jnp.zeros((e_pad,), jnp.int32).at[:E].set(src[order])
    order_p = jnp.zeros((e_pad,), jnp.int32).at[:E].set(order)
    # sentinel dst = n_pad: keeps sortedness, never matches any node row
    dst_s = jnp.full((e_pad,), n_pad, jnp.int32).at[:E].set(dst[order])

    pj = p[src_s]                                         # [e_pad, hp] bf16
    e_lane = _pad2(e, E, hp).astype(BF16)                 # [E, hp]
    e_s = e_lane[order_p]                                 # [e_pad, hp] bf16

    # ---- hoisted edge messages (computed once, destination-sorted order) ----
    msg = edge_msg(pj, e_s, w1b, b1, te)                  # [e_pad, hp] bf16

    # ---- static-length flattened (node-tile x edge-tile) visit schedule ----
    num_steps = nnt + net                                 # static upper bound
    tile_base = jnp.arange(nnt, dtype=jnp.int32) * tm
    lo = jnp.searchsorted(dst_s, tile_base)               # first edge with dst >= i*tm
    hi = jnp.searchsorted(dst_s, tile_base + tm)          # first edge with dst >= (i+1)*tm
    t_lo = jnp.minimum(lo // te, net - 1)
    t_hi = jnp.where(hi > lo, jnp.minimum((hi - 1) // te, net - 1), t_lo)
    nvis = (t_hi - t_lo + 1).astype(jnp.int32)            # >= 1 visit per node tile
    starts = jnp.concatenate([jnp.zeros((1,), jnp.int32),
                              jnp.cumsum(nvis).astype(jnp.int32)])
    total = starts[nnt]
    steps = jnp.arange(num_steps, dtype=jnp.int32)
    node_of = jnp.clip(jnp.searchsorted(starts, steps, side="right") - 1,
                       0, nnt - 1).astype(jnp.int32)
    edge_of = jnp.where(steps < total,
                        t_lo[node_of] + (steps - starts[node_of]),
                        t_hi[nnt - 1]).astype(jnp.int32)
    valid = steps < total
    is_first = valid & (steps == starts[node_of])
    is_last = valid & (steps == starts[node_of] + nvis[node_of] - 1)
    sched_flag = (is_first.astype(jnp.int32)
                  + 2 * is_last.astype(jnp.int32)
                  + 4 * valid.astype(jnp.int32))

    # ---- upper branch: row-tiled Pallas matmul + per-graph glue ----
    rows = B * C
    tr = min(512, _round_up(rows, 8))
    rows_pad = _round_up(rows, tr)
    attr_bf = _pad2(attr1.reshape(rows, H), rows_pad, hp).astype(BF16)
    msg_up = upper_msg(attr_bf, w2, b2, tr)[:rows].reshape(B, C, hp)
    agg_up = jnp.einsum("bnc,bch->bnh", nc1, msg_up.astype(jnp.float32),
                        precision=jax.lax.Precision.HIGHEST)[x_idx_b, x_idx_n]
    up_bf = _pad2(agg_up, n_pad, hp).astype(BF16)         # [n_pad, hp]

    out = fused_node_update(node_of, edge_of, sched_flag,
                            dst_s.reshape(1, e_pad), msg, x_node, up_bf, eps,
                            w3, b3, w4, b4, w5_bf, b5, tm=tm, te=te)
    return out[:N, :H]


# ---------------------------------------------------------------------------
# Pure-JAX reference.  mirror_bf16=True rounds inputs / stored intermediates
# to bf16 at the same points as the kernels, so only accumulation-order
# differences remain -> tight tolerance.
# ---------------------------------------------------------------------------
def nconv_reference(params, x, e, edge_index, attr1, nc1, x_idx_b, x_idx_n,
                    mirror_bf16=False):
    low = ((lambda a: a.astype(jnp.bfloat16).astype(jnp.float32))
           if mirror_bf16 else (lambda a: a))
    mm = lambda a, b: jnp.dot(low(a), low(b),
                              precision=jax.lax.Precision.HIGHEST,
                              preferred_element_type=jnp.float32)
    N, H = x.shape
    B, C, _ = attr1.shape
    eps1 = params["eps1"][0]
    eps2 = params["eps2"][0]

    p = low(mm(x, params["w1a"]))
    msg = low(jnp.maximum(p[edge_index[0]] + mm(e, params["w1b"]) + params["b1"], 0.0))
    agg_adj = jax.ops.segment_sum(msg, edge_index[1], num_segments=N)
    out_adj = jnp.maximum(
        mm(agg_adj + (1.0 + eps1) * low(x), params["w3"]) + params["b3"], 0.0)

    msg_up = low(jnp.maximum(
        mm(attr1.reshape(B * C, H), params["w2"]) + params["b2"],
        0.0)).reshape(B, C, H)
    agg_up = jnp.einsum("bnc,bch->bnh", nc1, msg_up,
                        precision=jax.lax.Precision.HIGHEST)[x_idx_b, x_idx_n]
    out_up = jnp.maximum(
        mm(low(agg_up) + (1.0 + eps2) * low(x), params["w4"]) + params["b4"], 0.0)

    cat = jnp.concatenate([out_adj, out_up], axis=-1)
    return mm(cat, params["w5"]) + params["b5"]


def _glorot(key, shape):
    fan_in, fan_out = shape[0], shape[-1]
    lim = (6.0 / (fan_in + fan_out)) ** 0.5
    return jax.random.uniform(key, shape, jnp.float32, -lim, lim)


if __name__ == "__main__":
    H = 32                       # hidden dim
    graph_sizes = (5, 7)         # two graphs
    N = sum(graph_sizes)         # 12 nodes total
    Nmax = max(graph_sizes)      # 7
    B = len(graph_sizes)         # 2
    C = 4                        # dense upper cells per graph

    key = jax.random.PRNGKey(0)
    ks = jax.random.split(key, 16)

    params = dict(
        w1a=_glorot(ks[0], (H, H)), w1b=_glorot(ks[1], (H, H)),
        b1=0.1 * jax.random.normal(ks[11], (1, H), jnp.float32),
        w2=_glorot(ks[2], (H, H)),
        b2=0.1 * jax.random.normal(ks[12], (1, H), jnp.float32),
        w3=_glorot(ks[3], (H, H)),
        b3=0.1 * jax.random.normal(ks[13], (1, H), jnp.float32),
        w4=_glorot(ks[4], (H, H)),
        b4=0.1 * jax.random.normal(ks[14], (1, H), jnp.float32),
        w5=_glorot(ks[5], (2 * H, H)),
        b5=0.1 * jax.random.normal(ks[15], (1, H), jnp.float32),
        eps1=jnp.asarray([0.10], jnp.float32),
        eps2=jnp.asarray([0.05], jnp.float32),
    )

    # path-graph edges (both directions) per graph, in global node ids
    edges = []
    offset = 0
    for sz in graph_sizes:
        for a in range(sz - 1):
            edges.append((offset + a, offset + a + 1))
            edges.append((offset + a + 1, offset + a))
        offset += sz
    edge_index = jnp.asarray(edges, dtype=jnp.int32).T          # [2, E], E = 20
    E = edge_index.shape[1]

    x = jax.random.normal(ks[7], (N, H), jnp.float32)            # param.x
    e = jax.random.normal(ks[8], (E, H), jnp.float32)            # param.e
    attr1 = jax.random.normal(ks[9], (B, C, H), jnp.float32)     # param.attr_list[1]
    nc1 = (jax.random.uniform(ks[10], (B, Nmax, C)) > 0.5).astype(jnp.float32)

    x_idx_b = jnp.asarray(sum(([g] * sz for g, sz in enumerate(graph_sizes)), []),
                          dtype=jnp.int32)
    x_idx_n = jnp.asarray(sum((list(range(sz)) for sz in graph_sizes), []),
                          dtype=jnp.int32)

    nconv = jax.jit(nconv_forward)
    out = jax.block_until_ready(
        nconv(params, x, e, edge_index, attr1, nc1, x_idx_b, x_idx_n))
    assert out.shape == (N, H)

    # tight check vs a bf16-mirrored reference (same rounding points)
    ref_bf = nconv_reference(params, x, e, edge_index, attr1, nc1,
                             x_idx_b, x_idx_n, mirror_bf16=True)
    err_bf = float(jnp.max(jnp.abs(out - ref_bf)))
    assert jnp.allclose(out, ref_bf, atol=3e-2, rtol=3e-2), f"bf16-mirror err {err_bf}"

    # loose sanity check vs the pure-f32 reference (documents bf16 MXU drift)
    ref_f32 = nconv_reference(params, x, e, edge_index, attr1, nc1,
                              x_idx_b, x_idx_n, mirror_bf16=False)
    err_f32 = float(jnp.max(jnp.abs(out - ref_f32)))
    assert jnp.allclose(out, ref_f32, atol=2e-1, rtol=6e-2), f"f32 err {err_f32}"

    print("KERNEL_OK")
</pallas_src>

<mosaic_0001>
module attributes {stable_mosaic.version = 11 : i64} {
  func.func @_node_proj_kernel(%arg0: i32, %arg1: memref<16x128xbf16, #tpu.memory_space<vmem>>, %arg2: memref<128x128xbf16, #tpu.memory_space<vmem>>, %arg3: memref<16x128xbf16, #tpu.memory_space<vmem>>) attributes {dimension_semantics = [#tpu.dimension_semantics<parallel>], iteration_bounds = array<i64: 1>, scalar_prefetch = 0 : i64, scratch_operands = 0 : i64, tpu.core_type = #tpu.core_type<tc>, window_params = [{transform_indices = @transform_0, window_bounds = array<i64: 16, 128>}, {pipeline_mode = #tpu.pipeline_mode<synchronous>, transform_indices = @transform_1, window_bounds = array<i64: 128, 128>}, {transform_indices = @transform_2, window_bounds = array<i64: 16, 128>}]} {
    %c0 = arith.constant 0 : index
    %c0_0 = arith.constant 0 : index
    %0 = vector.load %arg1[%c0, %c0_0] : memref<16x128xbf16, #tpu.memory_space<vmem>>, vector<16x128xbf16>
    %c0_1 = arith.constant 0 : index
    %c0_2 = arith.constant 0 : index
    %1 = vector.load %arg2[%c0_1, %c0_2] : memref<128x128xbf16, #tpu.memory_space<vmem>>, vector<128x128xbf16>
    %cst = arith.constant dense<0.000000e+00> : vector<16x128xf32>
    %2 = tpu.matmul %0, %1, %cst {dimension_numbers = #tpu.dot_dimension_numbers<[1], [0], [0], [1], [0, 0, 1, 1], [], []>} : vector<16x128xbf16>, vector<128x128xbf16>, vector<16x128xf32> -> vector<16x128xf32>
    %3 = arith.truncf %2 : vector<16x128xf32> to vector<16x128xbf16>
    %c0_3 = arith.constant 0 : index
    %c0_4 = arith.constant 0 : index
    %4 = vector.load %arg3[%c0_3, %c0_4] : memref<16x128xbf16, #tpu.memory_space<vmem>>, vector<16x128xbf16>
    tpu.vector_store %arg3[%c0_3, %c0_4], %3 {strides = array<i32>} : memref<16x128xbf16, #tpu.memory_space<vmem>>, vector<16x128xbf16>,
    return
  }
  func.func @transform_0(%arg0: i32) -> (i32, i32) {
    %c0_i32 = arith.constant 0 : i32
    %c0_i32_0 = arith.constant 0 : i32
    return %arg0, %c0_i32 : i32, i32
  }
  func.func @transform_1(%arg0: i32) -> (i32, i32) {
    %c0_i32 = arith.constant 0 : i32
    %c0_i32_0 = arith.constant 0 : i32
    %c0_i32_1 = arith.constant 0 : i32
    return %c0_i32, %c0_i32_0 : i32, i32
  }
  func.func @transform_2(%arg0: i32) -> (i32, i32) {
    %c0_i32 = arith.constant 0 : i32
    %c0_i32_0 = arith.constant 0 : i32
    return %arg0, %c0_i32 : i32, i32
  }
}

module attributes {stable_mosaic.version = 11 : i64} {
  func.func @_edge_msg_kernel(%arg0: i32, %arg1: memref<128x128xbf16, #tpu.memory_space<vmem>>, %arg2: memref<128x128xbf16, #tpu.memory_space<vmem>>, %arg3: memref<128x128xbf16, #tpu.memory_space<vmem>>, %arg4: memref<1x128xf32, #tpu.memory_space<vmem>>, %arg5: memref<128x128xbf16, #tpu.memory_space<vmem>>) attributes {dimension_semantics = [#tpu.dimension_semantics<parallel>], iteration_bounds = array<i64: 1>, scalar_prefetch = 0 : i64, scratch_operands = 0 : i64, tpu.core_type = #tpu.core_type<tc>, window_params = [{transform_indices = @transform_0, window_bounds = array<i64: 128, 128>}, {transform_indices = @transform_1, window_bounds = array<i64: 128, 128>}, {pipeline_mode = #tpu.pipeline_mode<synchronous>, transform_indices = @transform_2, window_bounds = array<i64: 128, 128>}, {pipeline_mode = #tpu.pipeline_mode<synchronous>, transform_indices = @transform_3, window_bounds = array<i64: 1, 128>}, {transform_indices = @transform_4, window_bounds = array<i64: 128, 128>}]} {
    %c0 = arith.constant 0 : index
    %c0_0 = arith.constant 0 : index
    %0 = vector.load %arg2[%c0, %c0_0] : memref<128x128xbf16, #tpu.memory_space<vmem>>, vector<128x128xbf16>
    %c0_1 = arith.constant 0 : index
    %c0_2 = arith.constant 0 : index
    %1 = vector.load %arg3[%c0_1, %c0_2] : memref<128x128xbf16, #tpu.memory_space<vmem>>, vector<128x128xbf16>
    %cst = arith.constant dense<0.000000e+00> : vector<128x128xf32>
    %2 = tpu.matmul %0, %1, %cst {dimension_numbers = #tpu.dot_dimension_numbers<[1], [0], [0], [1], [0, 0, 1, 1], [], []>} : vector<128x128xbf16>, vector<128x128xbf16>, vector<128x128xf32> -> vector<128x128xf32>
    %c0_3 = arith.constant 0 : index
    %c0_4 = arith.constant 0 : index
    %3 = vector.load %arg1[%c0_3, %c0_4] : memref<128x128xbf16, #tpu.memory_space<vmem>>, vector<128x128xbf16>
    %4 = arith.extf %3 : vector<128x128xbf16> to vector<128x128xf32>
    %5 = arith.addf %2, %4 : vector<128x128xf32>
    %c0_5 = arith.constant 0 : index
    %c0_6 = arith.constant 0 : index
    %6 = vector.load %arg4[%c0_5, %c0_6] : memref<1x128xf32, #tpu.memory_space<vmem>>, vector<1x128xf32>
    %7 = vector.broadcast %6 : vector<1x128xf32> to vector<128x128xf32>
    %8 = arith.addf %5, %7 : vector<128x128xf32>
    %cst_7 = arith.constant 0.000000e+00 : f32
    %9 = vector.broadcast %cst_7 : f32 to vector<128x128xf32>
    %10 = arith.maximumf %8, %9 : vector<128x128xf32>
    %11 = arith.truncf %10 : vector<128x128xf32> to vector<128x128xbf16>
    %c0_8 = arith.constant 0 : index
    %c0_9 = arith.constant 0 : index
    %12 = vector.load %arg5[%c0_8, %c0_9] : memref<128x128xbf16, #tpu.memory_space<vmem>>, vector<128x128xbf16>
    tpu.vector_store %arg5[%c0_8, %c0_9], %11 {strides = array<i32>} : memref<128x128xbf16, #tpu.memory_space<vmem>>, vector<128x128xbf16>,
    return
  }
  func.func @transform_0(%arg0: i32) -> (i32, i32) {
    %c0_i32 = arith.constant 0 : i32
    %c0_i32_0 = arith.constant 0 : i32
    return %arg0, %c0_i32 : i32, i32
  }
  func.func @transform_1(%arg0: i32) -> (i32, i32) {
    %c0_i32 = arith.constant 0 : i32
    %c0_i32_0 = arith.constant 0 : i32
    return %arg0, %c0_i32 : i32, i32
  }
  func.func @transform_2(%arg0: i32) -> (i32, i32) {
    %c0_i32 = arith.constant 0 : i32
    %c0_i32_0 = arith.constant 0 : i32
    %c0_i32_1 = arith.constant 0 : i32
    return %c0_i32, %c0_i32_0 : i32, i32
  }
  func.func @transform_3(%arg0: i32) -> (i32, i32) {
    %c0_i32 = arith.constant 0 : i32
    %c0_i32_0 = arith.constant 0 : i32
    %c0_i32_1 = arith.constant 0 : i32
    return %c0_i32, %c0_i32_0 : i32, i32
  }
  func.func @transform_4(%arg0: i32) -> (i32, i32) {
    %c0_i32 = arith.constant 0 : i32
    %c0_i32_0 = arith.constant 0 : i32
    return %arg0, %c0_i32 : i32, i32
  }
}

module attributes {stable_mosaic.version = 11 : i64} {
  func.func @_upper_msg_kernel(%arg0: i32, %arg1: memref<8x128xbf16, #tpu.memory_space<vmem>>, %arg2: memref<128x128xbf16, #tpu.memory_space<vmem>>, %arg3: memref<1x128xf32, #tpu.memory_space<vmem>>, %arg4: memref<8x128xbf16, #tpu.memory_space<vmem>>) attributes {dimension_semantics = [#tpu.dimension_semantics<parallel>], iteration_bounds = array<i64: 1>, scalar_prefetch = 0 : i64, scratch_operands = 0 : i64, tpu.core_type = #tpu.core_type<tc>, window_params = [{transform_indices = @transform_0, window_bounds = array<i64: 8, 128>}, {pipeline_mode = #tpu.pipeline_mode<synchronous>, transform_indices = @transform_1, window_bounds = array<i64: 128, 128>}, {pipeline_mode = #tpu.pipeline_mode<synchronous>, transform_indices = @transform_2, window_bounds = array<i64: 1, 128>}, {transform_indices = @transform_3, window_bounds = array<i64: 8, 128>}]} {
    %c0 = arith.constant 0 : index
    %c0_0 = arith.constant 0 : index
    %0 = vector.load %arg1[%c0, %c0_0] : memref<8x128xbf16, #tpu.memory_space<vmem>>, vector<8x128xbf16>
    %c0_1 = arith.constant 0 : index
    %c0_2 = arith.constant 0 : index
    %1 = vector.load %arg2[%c0_1, %c0_2] : memref<128x128xbf16, #tpu.memory_space<vmem>>, vector<128x128xbf16>
    %cst = arith.constant dense<0.000000e+00> : vector<8x128xf32>
    %2 = tpu.matmul %0, %1, %cst {dimension_numbers = #tpu.dot_dimension_numbers<[1], [0], [0], [1], [0, 0, 1, 1], [], []>} : vector<8x128xbf16>, vector<128x128xbf16>, vector<8x128xf32> -> vector<8x128xf32>
    %c0_3 = arith.constant 0 : index
    %c0_4 = arith.constant 0 : index
    %3 = vector.load %arg3[%c0_3, %c0_4] : memref<1x128xf32, #tpu.memory_space<vmem>>, vector<1x128xf32>
    %4 = vector.broadcast %3 : vector<1x128xf32> to vector<8x128xf32>
    %5 = arith.addf %2, %4 : vector<8x128xf32>
    %cst_5 = arith.constant 0.000000e+00 : f32
    %6 = vector.broadcast %cst_5 : f32 to vector<8x128xf32>
    %7 = arith.maximumf %5, %6 : vector<8x128xf32>
    %8 = arith.truncf %7 : vector<8x128xf32> to vector<8x128xbf16>
    %c0_6 = arith.constant 0 : index
    %c0_7 = arith.constant 0 : index
    %9 = vector.load %arg4[%c0_6, %c0_7] : memref<8x128xbf16, #tpu.memory_space<vmem>>, vector<8x128xbf16>
    tpu.vector_store %arg4[%c0_6, %c0_7], %8 {strides = array<i32>} : memref<8x128xbf16, #tpu.memory_space<vmem>>, vector<8x128xbf16>,
    return
  }
  func.func @transform_0(%arg0: i32) -> (i32, i32) {
    %c0_i32 = arith.constant 0 : i32
    %c0_i32_0 = arith.constant 0 : i32
    return %arg0, %c0_i32 : i32, i32
  }
  func.func @transform_1(%arg0: i32) -> (i32, i32) {
    %c0_i32 = arith.constant 0 : i32
    %c0_i32_0 = arith.constant 0 : i32
    %c0_i32_1 = arith.constant 0 : i32
    return %c0_i32, %c0_i32_0 : i32, i32
  }
  func.func @transform_2(%arg0: i32) -> (i32, i32) {
    %c0_i32 = arith.constant 0 : i32
    %c0_i32_0 = arith.constant 0 : i32
    %c0_i32_1 = arith.constant 0 : i32
    return %c0_i32, %c0_i32_0 : i32, i32
  }
  func.func @transform_3(%arg0: i32) -> (i32, i32) {
    %c0_i32 = arith.constant 0 : i32
    %c0_i32_0 = arith.constant 0 : i32
    return %arg0, %c0_i32 : i32, i32
  }
}

module attributes {stable_mosaic.version = 11 : i64} {
  func.func @_fused_node_kernel(%arg0: i32, %arg1: memref<2xi32, #tpu.memory_space<smem>>, %arg2: memref<2xi32, #tpu.memory_space<smem>>, %arg3: memref<2xi32, #tpu.memory_space<smem>>, %arg4: memref<1x128xi32, #tpu.memory_space<vmem>>, %arg5: memref<128x128xbf16, #tpu.memory_space<vmem>>, %arg6: memref<16x128xbf16, #tpu.memory_space<vmem>>, %arg7: memref<16x128xbf16, #tpu.memory_space<vmem>>, %arg8: memref<2xf32, #tpu.memory_space<smem>>, %arg9: memref<128x128xbf16, #tpu.memory_space<vmem>>, %arg10: memref<1x128xf32, #tpu.memory_space<vmem>>, %arg11: memref<128x128xbf16, #tpu.memory_space<vmem>>, %arg12: memref<1x128xf32, #tpu.memory_space<vmem>>, %arg13: memref<256x128xbf16, #tpu.memory_space<vmem>>, %arg14: memref<1x128xf32, #tpu.memory_space<vmem>>, %arg15: memref<16x128xf32, #tpu.memory_space<vmem>>, %arg16: memref<16x128xf32, #tpu.memory_space<vmem>>) attributes {dimension_semantics = [#tpu.dimension_semantics<arbitrary>], iteration_bounds = array<i64: 2>, scalar_prefetch = 3 : i64, scratch_operands = 1 : i64, tpu.core_type = #tpu.core_type<tc>, window_params = [{transform_indices = @transform_0, window_bounds = array<i64: 1, 128>}, {transform_indices = @transform_1, window_bounds = array<i64: 128, 128>}, {transform_indices = @transform_2, window_bounds = array<i64: 16, 128>}, {transform_indices = @transform_3, window_bounds = array<i64: 16, 128>}, {transform_indices = @transform_4, window_bounds = array<i64: 2>}, {pipeline_mode = #tpu.pipeline_mode<synchronous>, transform_indices = @transform_5, window_bounds = array<i64: 128, 128>}, {pipeline_mode = #tpu.pipeline_mode<synchronous>, transform_indices = @transform_6, window_bounds = array<i64: 1, 128>}, {pipeline_mode = #tpu.pipeline_mode<synchronous>, transform_indices = @transform_7, window_bounds = array<i64: 128, 128>}, {pipeline_mode = #tpu.pipeline_mode<synchronous>, transform_indices = @transform_8, window_bounds = array<i64: 1, 128>}, {pipeline_mode = #tpu.pipeline_mode<synchronous>, transform_indices = @transform_9, window_bounds = array<i64: 256, 128>}, {pipeline_mode = #tpu.pipeline_mode<synchronous>, transform_indices = @transform_10, window_bounds = array<i64: 1, 128>}, {transform_indices = @transform_11, window_bounds = array<i64: 16, 128>}]} {
    %0 = arith.index_cast %arg0 : i32 to index
    %1 = memref.load %arg3[%0] : memref<2xi32, #tpu.memory_space<smem>>
    %c1_i32 = arith.constant 1 : i32
    %2 = arith.andi %1, %c1_i32 : i32
    %c0_i32 = arith.constant 0 : i32
    %3 = arith.cmpi ne, %2, %c0_i32 : i32
    %4 = arith.extui %3 : i1 to i32
    %c0_i32_0 = arith.constant 0 : i32
    %5 = arith.cmpi ne, %4, %c0_i32_0 : i32
    scf.if %5 {
      %cst = arith.constant 0.000000e+00 : f32
      %14 = vector.broadcast %cst : f32 to vector<16x128xf32>
      %c0 = arith.constant 0 : index
      %c0_5 = arith.constant 0 : index
      %15 = vector.load %arg16[%c0, %c0_5] : memref<16x128xf32, #tpu.memory_space<vmem>>, vector<16x128xf32>
      tpu.vector_store %arg16[%c0, %c0_5], %14 {strides = array<i32>} : memref<16x128xf32, #tpu.memory_space<vmem>>, vector<16x128xf32>,
    } else {
    }
    %c4_i32 = arith.constant 4 : i32
    %6 = arith.andi %1, %c4_i32 : i32
    %c0_i32_1 = arith.constant 0 : i32
    %7 = arith.cmpi ne, %6, %c0_i32_1 : i32
    %8 = arith.extui %7 : i1 to i32
    %c0_i32_2 = arith.constant 0 : i32
    %9 = arith.cmpi ne, %8, %c0_i32_2 : i32
    scf.if %9 {
      %14 = arith.index_cast %arg0 : i32 to index
      %15 = memref.load %arg1[%14] : memref<2xi32, #tpu.memory_space<smem>>
      %c16_i32 = arith.constant 16 : i32
      %16 = arith.muli %15, %c16_i32 : i32
      %17 = tpu.iota {dimensions = array<i32: 0>} : vector<16x128xi32>
      %18 = vector.broadcast %16 : i32 to vector<16x128xi32>
      %19 = arith.addi %18, %17 : vector<16x128xi32>
      %c0 = arith.constant 0 : index
      %c0_5 = arith.constant 0 : index
      %20 = vector.load %arg4[%c0, %c0_5] : memref<1x128xi32, #tpu.memory_space<vmem>>, vector<1x128xi32>
      %21 = vector.broadcast %20 : vector<1x128xi32> to vector<16x128xi32>
      %22 = arith.cmpi eq, %19, %21 : vector<16x128xi32>
      %23 = arith.extui %22 : vector<16x128xi1> to vector<16x128xi32>
      %24 = arith.sitofp %23 : vector<16x128xi32> to vector<16x128xf32>
      %25 = arith.truncf %24 : vector<16x128xf32> to vector<16x128xbf16>
      %c0_6 = arith.constant 0 : index
      %c0_7 = arith.constant 0 : index
      %26 = vector.load %arg16[%c0_6, %c0_7] : memref<16x128xf32, #tpu.memory_space<vmem>>, vector<16x128xf32>
      %c0_8 = arith.constant 0 : index
      %c0_9 = arith.constant 0 : index
      %27 = vector.load %arg5[%c0_8, %c0_9] : memref<128x128xbf16, #tpu.memory_space<vmem>>, vector<128x128xbf16>
      %cst = arith.constant dense<0.000000e+00> : vector<16x128xf32>
      %28 = tpu.matmul %25, %27, %cst {dimension_numbers = #tpu.dot_dimension_numbers<[1], [0], [0], [1], [0, 0, 1, 1], [], []>} : vector<16x128xbf16>, vector<128x128xbf16>, vector<16x128xf32> -> vector<16x128xf32>
      %29 = arith.addf %26, %28 : vector<16x128xf32>
      %c0_10 = arith.constant 0 : index
      %c0_11 = arith.constant 0 : index
      %30 = vector.load %arg16[%c0_10, %c0_11] : memref<16x128xf32, #tpu.memory_space<vmem>>, vector<16x128xf32>
      tpu.vector_store %arg16[%c0_10, %c0_11], %29 {strides = array<i32>} : memref<16x128xf32, #tpu.memory_space<vmem>>, vector<16x128xf32>,
    } else {
    }
    %c2_i32 = arith.constant 2 : i32
    %10 = arith.andi %1, %c2_i32 : i32
    %c0_i32_3 = arith.constant 0 : i32
    %11 = arith.cmpi ne, %10, %c0_i32_3 : i32
    %12 = arith.extui %11 : i1 to i32
    %c0_i32_4 = arith.constant 0 : i32
    %13 = arith.cmpi ne, %12, %c0_i32_4 : i32
    scf.if %13 {
      %c0 = arith.constant 0 : index
      %14 = memref.load %arg8[%c0] : memref<2xf32, #tpu.memory_space<smem>>
      %c1 = arith.constant 1 : index
      %15 = memref.load %arg8[%c1] : memref<2xf32, #tpu.memory_space<smem>>
      %c0_5 = arith.constant 0 : index
      %c0_6 = arith.constant 0 : index
      %16 = vector.load %arg6[%c0_5, %c0_6] : memref<16x128xbf16, #tpu.memory_space<vmem>>, vector<16x128xbf16>
      %17 = arith.extf %16 : vector<16x128xbf16> to vector<16x128xf32>
      %c0_7 = arith.constant 0 : index
      %c0_8 = arith.constant 0 : index
      %18 = vector.load %arg16[%c0_7, %c0_8] : memref<16x128xf32, #tpu.memory_space<vmem>>, vector<16x128xf32>
      %cst = arith.constant 1.000000e+00 : f32
      %19 = arith.addf %cst, %14 : f32
      %20 = vector.broadcast %19 : f32 to vector<16x128xf32>
      %21 = arith.mulf %20, %17 : vector<16x128xf32>
      %22 = arith.addf %18, %21 : vector<16x128xf32>
      %23 = arith.truncf %22 : vector<16x128xf32> to vector<16x128xbf16>
      %c0_9 = arith.constant 0 : index
      %c0_10 = arith.constant 0 : index
      %24 = vector.load %arg9[%c0_9, %c0_10] : memref<128x128xbf16, #tpu.memory_space<vmem>>, vector<128x128xbf16>
      %cst_11 = arith.constant dense<0.000000e+00> : vector<16x128xf32>
      %25 = tpu.matmul %23, %24, %cst_11 {dimension_numbers = #tpu.dot_dimension_numbers<[1], [0], [0], [1], [0, 0, 1, 1], [], []>} : vector<16x128xbf16>, vector<128x128xbf16>, vector<16x128xf32> -> vector<16x128xf32>
      %c0_12 = arith.constant 0 : index
      %c0_13 = arith.constant 0 : index
      %26 = vector.load %arg10[%c0_12, %c0_13] : memref<1x128xf32, #tpu.memory_space<vmem>>, vector<1x128xf32>
      %27 = vector.broadcast %26 : vector<1x128xf32> to vector<16x128xf32>
      %28 = arith.addf %25, %27 : vector<16x128xf32>
      %cst_14 = arith.constant 0.000000e+00 : f32
      %29 = vector.broadcast %cst_14 : f32 to vector<16x128xf32>
      %30 = arith.maximumf %28, %29 : vector<16x128xf32>
      %c0_15 = arith.constant 0 : index
      %c0_16 = arith.constant 0 : index
      %31 = vector.load %arg7[%c0_15, %c0_16] : memref<16x128xbf16, #tpu.memory_space<vmem>>, vector<16x128xbf16>
      %32 = arith.extf %31 : vector<16x128xbf16> to vector<16x128xf32>
      %cst_17 = arith.constant 1.000000e+00 : f32
      %33 = arith.addf %cst_17, %15 : f32
      %34 = vector.broadcast %33 : f32 to vector<16x128xf32>
      %35 = arith.mulf %34, %17 : vector<16x128xf32>
      %36 = arith.addf %32, %35 : vector<16x128xf32>
      %37 = arith.truncf %36 : vector<16x128xf32> to vector<16x128xbf16>
      %c0_18 = arith.constant 0 : index
      %c0_19 = arith.constant 0 : index
      %38 = vector.load %arg11[%c0_18, %c0_19] : memref<128x128xbf16, #tpu.memory_space<vmem>>, vector<128x128xbf16>
      %cst_20 = arith.constant dense<0.000000e+00> : vector<16x128xf32>
      %39 = tpu.matmul %37, %38, %cst_20 {dimension_numbers = #tpu.dot_dimension_numbers<[1], [0], [0], [1], [0, 0, 1, 1], [], []>} : vector<16x128xbf16>, vector<128x128xbf16>, vector<16x128xf32> -> vector<16x128xf32>
      %c0_21 = arith.constant 0 : index
      %c0_22 = arith.constant 0 : index
      %40 = vector.load %arg12[%c0_21, %c0_22] : memref<1x128xf32, #tpu.memory_space<vmem>>, vector<1x128xf32>
      %41 = vector.broadcast %40 : vector<1x128xf32> to vector<16x128xf32>
      %42 = arith.addf %39, %41 : vector<16x128xf32>
      %cst_23 = arith.constant 0.000000e+00 : f32
      %43 = vector.broadcast %cst_23 : f32 to vector<16x128xf32>
      %44 = arith.maximumf %42, %43 : vector<16x128xf32>
      %45 = arith.truncf %30 : vector<16x128xf32> to vector<16x128xbf16>
      %46 = arith.truncf %44 : vector<16x128xf32> to vector<16x128xbf16>
      %47 = tpu.concatenate %45, %46 in 1 : vector<16x128xbf16>, vector<16x128xbf16> -> vector<16x256xbf16>
      %c0_24 = arith.constant 0 : index
      %c0_25 = arith.constant 0 : index
      %48 = vector.load %arg13[%c0_24, %c0_25] : memref<256x128xbf16, #tpu.memory_space<vmem>>, vector<256x128xbf16>
      %cst_26 = arith.constant dense<0.000000e+00> : vector<16x128xf32>
      %49 = tpu.matmul %47, %48, %cst_26 {dimension_numbers = #tpu.dot_dimension_numbers<[1], [0], [0], [1], [0, 0, 1, 1], [], []>} : vector<16x256xbf16>, vector<256x128xbf16>, vector<16x128xf32> -> vector<16x128xf32>
      %c0_27 = arith.constant 0 : index
      %c0_28 = arith.constant 0 : index
      %50 = vector.load %arg14[%c0_27, %c0_28] : memref<1x128xf32, #tpu.memory_space<vmem>>, vector<1x128xf32>
      %51 = vector.broadcast %50 : vector<1x128xf32> to vector<16x128xf32>
      %52 = arith.addf %49, %51 : vector<16x128xf32>
      %c0_29 = arith.constant 0 : index
      %c0_30 = arith.constant 0 : index
      %53 = vector.load %arg15[%c0_29, %c0_30] : memref<16x128xf32, #tpu.memory_space<vmem>>, vector<16x128xf32>
      tpu.vector_store %arg15[%c0_29, %c0_30], %52 {strides = array<i32>} : memref<16x128xf32, #tpu.memory_space<vmem>>, vector<16x128xf32>,
    } else {
    }
    return
  }
  func.func @transform_0(%arg0: i32, %arg1: memref<2xi32, #tpu.memory_space<smem>>, %arg2: memref<2xi32, #tpu.memory_space<smem>>, %arg3: memref<2xi32, #tpu.memory_space<smem>>) -> (i32, i32) {
    %0 = arith.index_cast %arg0 : i32 to index
    %1 = memref.load %arg2[%0] : memref<2xi32, #tpu.memory_space<smem>>
    %c0_i32 = arith.constant 0 : i32
    %c0_i32_0 = arith.constant 0 : i32
    return %c0_i32, %1 : i32, i32
  }
  func.func @transform_1(%arg0: i32, %arg1: memref<2xi32, #tpu.memory_space<smem>>, %arg2: memref<2xi32, #tpu.memory_space<smem>>, %arg3: memref<2xi32, #tpu.memory_space<smem>>) -> (i32, i32) {
    %0 = arith.index_cast %arg0 : i32 to index
    %1 = memref.load %arg2[%0] : memref<2xi32, #tpu.memory_space<smem>>
    %c0_i32 = arith.constant 0 : i32
    %c0_i32_0 = arith.constant 0 : i32
    return %1, %c0_i32 : i32, i32
  }
  func.func @transform_2(%arg0: i32, %arg1: memref<2xi32, #tpu.memory_space<smem>>, %arg2: memref<2xi32, #tpu.memory_space<smem>>, %arg3: memref<2xi32, #tpu.memory_space<smem>>) -> (i32, i32) {
    %0 = arith.index_cast %arg0 : i32 to index
    %1 = memref.load %arg1[%0] : memref<2xi32, #tpu.memory_space<smem>>
    %c0_i32 = arith.constant 0 : i32
    %c0_i32_0 = arith.constant 0 : i32
    return %1, %c0_i32 : i32, i32
  }
  func.func @transform_3(%arg0: i32, %arg1: memref<2xi32, #tpu.memory_space<smem>>, %arg2: memref<2xi32, #tpu.memory_space<smem>>, %arg3: memref<2xi32, #tpu.memory_space<smem>>) -> (i32, i32) {
    %0 = arith.index_cast %arg0 : i32 to index
    %1 = memref.load %arg1[%0] : memref<2xi32, #tpu.memory_space<smem>>
    %c0_i32 = arith.constant 0 : i32
    %c0_i32_0 = arith.constant 0 : i32
    return %1, %c0_i32 : i32, i32
  }
  func.func @transform_4(%arg0: i32, %arg1: memref<2xi32, #tpu.memory_space<smem>>, %arg2: memref<2xi32, #tpu.memory_space<smem>>, %arg3: memref<2xi32, #tpu.memory_space<smem>>) -> i32 {
    %c0_i32 = arith.constant 0 : i32
    %c0_i32_0 = arith.constant 0 : i32
    return %c0_i32 : i32
  }
  func.func @transform_5(%arg0: i32, %arg1: memref<2xi32, #tpu.memory_space<smem>>, %arg2: memref<2xi32, #tpu.memory_space<smem>>, %arg3: memref<2xi32, #tpu.memory_space<smem>>) -> (i32, i32) {
    %c0_i32 = arith.constant 0 : i32
    %c0_i32_0 = arith.constant 0 : i32
    %c0_i32_1 = arith.constant 0 : i32
    return %c0_i32, %c0_i32_0 : i32, i32
  }
  func.func @transform_6(%arg0: i32, %arg1: memref<2xi32, #tpu.memory_space<smem>>, %arg2: memref<2xi32, #tpu.memory_space<smem>>, %arg3: memref<2xi32, #tpu.memory_space<smem>>) -> (i32, i32) {
    %c0_i32 = arith.constant 0 : i32
    %c0_i32_0 = arith.constant 0 : i32
    %c0_i32_1 = arith.constant 0 : i32
    return %c0_i32, %c0_i32_0 : i32, i32
  }
  func.func @transform_7(%arg0: i32, %arg1: memref<2xi32, #tpu.memory_space<smem>>, %arg2: memref<2xi32, #tpu.memory_space<smem>>, %arg3: memref<2xi32, #tpu.memory_space<smem>>) -> (i32, i32) {
    %c0_i32 = arith.constant 0 : i32
    %c0_i32_0 = arith.constant 0 : i32
    %c0_i32_1 = arith.constant 0 : i32
    return %c0_i32, %c0_i32_0 : i32, i32
  }
  func.func @transform_8(%arg0: i32, %arg1: memref<2xi32, #tpu.memory_space<smem>>, %arg2: memref<2xi32, #tpu.memory_space<smem>>, %arg3: memref<2xi32, #tpu.memory_space<smem>>) -> (i32, i32) {
    %c0_i32 = arith.constant 0 : i32
    %c0_i32_0 = arith.constant 0 : i32
    %c0_i32_1 = arith.constant 0 : i32
    return %c0_i32, %c0_i32_0 : i32, i32
  }
  func.func @transform_9(%arg0: i32, %arg1: memref<2xi32, #tpu.memory_space<smem>>, %arg2: memref<2xi32, #tpu.memory_space<smem>>, %arg3: memref<2xi32, #tpu.memory_space<smem>>) -> (i32, i32) {
    %c0_i32 = arith.constant 0 : i32
    %c0_i32_0 = arith.constant 0 : i32
    %c0_i32_1 = arith.constant 0 : i32
    return %c0_i32, %c0_i32_0 : i32, i32
  }
  func.func @transform_10(%arg0: i32, %arg1: memref<2xi32, #tpu.memory_space<smem>>, %arg2: memref<2xi32, #tpu.memory_space<smem>>, %arg3: memref<2xi32, #tpu.memory_space<smem>>) -> (i32, i32) {
    %c0_i32 = arith.constant 0 : i32
    %c0_i32_0 = arith.constant 0 : i32
    %c0_i32_1 = arith.constant 0 : i32
    return %c0_i32, %c0_i32_0 : i32, i32
  }
  func.func @transform_11(%arg0: i32, %arg1: memref<2xi32, #tpu.memory_space<smem>>, %arg2: memref<2xi32, #tpu.memory_space<smem>>, %arg3: memref<2xi32, #tpu.memory_space<smem>>) -> (i32, i32) {
    %0 = arith.index_cast %arg0 : i32 to index
    %1 = memref.load %arg1[%0] : memref<2xi32, #tpu.memory_space<smem>>
    %c0_i32 = arith.constant 0 : i32
    %c0_i32_0 = arith.constant 0 : i32
    return %1, %c0_i32 : i32, i32
  }
}

</mosaic_0001>

<llo_original>
// kernel: custom-call.2
$region0: #{custom-call.2}
  %s0 = inlined_call_operand.vmem [shape: u32[2], index: 0, kind: output, shape index: {}]

// kernel: nconv_forward.4
$region0: #{nconv_forward.4}
  #allocation0 [shape = 'u32[]', space=smem, size = 0x4, offset = 0x4, fixed_abs, tag = 'smem constant byte address 0x4 - core index']
  #allocation1 [shape = 'u32[144,128]{1,0:T(1,128)}', space=vmem, size = 0x12000, scoped, tag = 'internal scratch']
  %s0 = inlined_call_operand.vmem [shape: bf16[16,128], index: 0, kind: input, shape index: {}]
  %s1 = inlined_call_operand.vmem [shape: bf16[128,128], index: 1, kind: input, shape index: {}]
  %s2 = inlined_call_operand.vmem [shape: bf16[16,128], index: 2, kind: output, shape index: {}]
  %s3 = sld [smem:[#allocation0]]
  $region18: #{nconv_forward.4} parent=0
    _
  %s5 = ssub.s32 1, %s3
  %s6 = scalar_select 0, %s5, %s3
  // Predicated region
  $region2: #{nconv_forward.4} parent=0 // pred_check
    _
  $region3: #{nconv_forward.4} parent=0 // pred_check_branch
    %8 = sbr.rel (0) target = $region5
  $region4: #{nconv_forward.4} parent=0 // pred_region
    _
  $region5: #{nconv_forward.4} parent=0 // pred_fallthru
    _
  // Predicated region
  $region6: #{nconv_forward.4} parent=0 // pred_check
    _
  $region7: #{nconv_forward.4} parent=0 // pred_check_branch
    %10 = sbr.rel (0) target = $region9
  $region8: #{nconv_forward.4} parent=0 // pred_region
    _
  $region9: #{nconv_forward.4} parent=0 // pred_fallthru
    _
  %v12 = vld [vmem:[%s0] sm:$0xf]
  %v13 = vld [vmem:[%s0 + $0x4] sm:$0xf]
  %v14 = vld [vmem:[%s1] sm:$0xf]
  %v15 = vld [vmem:[%s1 + $0x4] sm:$0xf]
  %v16 = vld [vmem:[%s1 + $0x8] sm:$0xf]
  %v17 = vld [vmem:[%s1 + $0xc] sm:$0xf]
  %v18 = vld [vmem:[%s1 + $0x10] sm:$0xf]
  %v19 = vld [vmem:[%s1 + $0x14] sm:$0xf]
  %v20 = vld [vmem:[%s1 + $0x18] sm:$0xf]
  %v21 = vld [vmem:[%s1 + $0x1c] sm:$0xf]
  %v22 = vld [vmem:[%s1 + $0x20] sm:$0xf]
  %v23 = vld [vmem:[%s1 + $0x24] sm:$0xf]
  %v24 = vld [vmem:[%s1 + $0x28] sm:$0xf]
  %v25 = vld [vmem:[%s1 + $0x2c] sm:$0xf]
  %v26 = vld [vmem:[%s1 + $0x30] sm:$0xf]
  %v27 = vld [vmem:[%s1 + $0x34] sm:$0xf]
  %v28 = vld [vmem:[%s1 + $0x38] sm:$0xf]
  %v29 = vld [vmem:[%s1 + $0x3c] sm:$0xf]
  %v32 = vunpack.c.l.b16 %v12
  %v33 = vunpack.c.l.b16 %v13
  %v34 = vpack.c.b16 %v33, %v32
  %v52 = vunpack.c.l.b16 %v14
  %v53 = vunpack.c.l.b16 %v15
  %v54 = vunpack.c.l.b16 %v16
  %v55 = vunpack.c.l.b16 %v17
  %v56 = vunpack.c.l.b16 %v18
  %v57 = vunpack.c.l.b16 %v19
  %v58 = vunpack.c.l.b16 %v20
  %v59 = vunpack.c.l.b16 %v21
  %v60 = vunpack.c.l.b16 %v22
  %v61 = vunpack.c.l.b16 %v23
  %v62 = vunpack.c.l.b16 %v24
  %v63 = vunpack.c.l.b16 %v25
  %v64 = vunpack.c.l.b16 %v26
  %v65 = vunpack.c.l.b16 %v27
  %v66 = vunpack.c.l.b16 %v28
  %v67 = vunpack.c.l.b16 %v29
  %v68 = vpack.c.b16 %v53, %v52
  %v69 = vpack.c.b16 %v55, %v54
  %v70 = vpack.c.b16 %v57, %v56
  %v71 = vpack.c.b16 %v59, %v58
  %v72 = vpack.c.b16 %v61, %v60
  %v73 = vpack.c.b16 %v63, %v62
  %v74 = vpack.c.b16 %v65, %v64
  %v75 = vpack.c.b16 %v67, %v66
  %84 = vmatprep.subr.bf16.mxu0 0
  %85 = vmatpush1.bf16.msra.mxu0 %v75
  %86 = vmatprep.subr.bf16.mxu0 0
  %87 = vmatpush1.bf16.msra.mxu0 %v74
  %88 = vmatprep.subr.bf16.mxu0 0
  %89 = vmatpush1.bf16.msra.mxu0 %v73
  %90 = vmatprep.subr.bf16.mxu0 0
  %91 = vmatpush1.bf16.msra.mxu0 %v72
  %92 = vmatprep.subr.bf16.mxu0 0
  %93 = vmatpush1.bf16.msra.mxu0 %v71
  %94 = vmatprep.subr.bf16.mxu0 0
  %95 = vmatpush1.bf16.msra.mxu0 %v70
  %96 = vmatprep.subr.bf16.mxu0 0
  %97 = vmatpush1.bf16.msra.mxu0 %v69
  %98 = vmatprep.subr.bf16.mxu0 0
  %99 = vmatpush1.bf16.msra.mxu0 %v68
  %100 = vmatprep.subr.bf16.mxu0 0
  %101 = vmatpush2.bf16.msra.mxu0 0
  %102 = vmatprep.subr.bf16.mxu0 0
  %103 = vmatpush2.bf16.msra.mxu0 0
  %104 = vmatprep.subr.bf16.mxu0 0
  %105 = vmatpush2.bf16.msra.mxu0 0
  %106 = vmatprep.subr.bf16.mxu0 0
  %107 = vmatpush2.bf16.msra.mxu0 0
  %108 = vmatprep.subr.bf16.mxu0 0
  %109 = vmatpush2.bf16.msra.mxu0 0
  %110 = vmatprep.subr.bf16.mxu0 0
  %111 = vmatpush2.bf16.msra.mxu0 0
  %112 = vmatprep.subr.bf16.mxu0 0
  %113 = vmatpush2.bf16.msra.mxu0 0
  %114 = vmatprep.subr.bf16.mxu0 0
  %115 = vmatpush2.bf16.msra.mxu0 0
  %116 = vmatprep.mubr.bf16.mxu0 0
  %117 = vmatmul.mubr.bf16.gmra.mxu0 %v34
  %v118 = vpop.f32.mrf.mxu0
  %v119 = vadd.f32 0.0, %v118
  %v120 = vpop.f32.mrf.mxu0
  %v121 = vpop.f32.mrf.mxu0
  %v122 = vadd.f32 0.0, %v121
  %v123 = vpop.f32.mrf.mxu0
  %124 = vdwg.mxu0
  %v125 = vpack.c.bf16 %v122, %v119
  %v127 = vunpack.c.l.b16 %v125
  %v128 = vunpack.c.h.b16 %v125
  %v129 = vpack.c.b16 %v127, %v127
  %v130 = vpack.c.b16 %v128, %v128
  %133 = vst [vmem:[%s2] sm:$0xf] %v129
  %134 = vst [vmem:[%s2 + $0x4] sm:$0xf] %v130
  // Predicated region
  $region10: #{nconv_forward.4} parent=0 // pred_check
    _
  $region11: #{nconv_forward.4} parent=0 // pred_check_branch
    %136 = sbr.rel (0) target = $region13
  $region12: #{nconv_forward.4} parent=0 // pred_region
    _
  $region13: #{nconv_forward.4} parent=0 // pred_fallthru
    _
  // Predicated region
  $region14: #{nconv_forward.4} parent=0 // pred_check
    _
  $region15: #{nconv_forward.4} parent=0 // pred_check_branch
    %138 = sbr.rel (0) target = $region17
  $region16: #{nconv_forward.4} parent=0 // pred_region
    _
  $region17: #{nconv_forward.4} parent=0 // pred_fallthru
    _

// kernel: nconv_forward.5
$region0: #{nconv_forward.5}
  #allocation0 [shape = 'u32[]', space=smem, size = 0x4, offset = 0x4, fixed_abs, tag = 'smem constant byte address 0x4 - core index']
  #allocation1 [shape = 'u32[144,128]{1,0:T(1,128)}', space=vmem, size = 0x12000, scoped, tag = 'internal scratch']
  %s0 = inlined_call_operand.vmem [shape: bf16[128,128], index: 0, kind: input, shape index: {}]
  %s1 = inlined_call_operand.vmem [shape: bf16[128,128], index: 1, kind: input, shape index: {}]
  %s2 = inlined_call_operand.vmem [shape: bf16[128,128], index: 2, kind: input, shape index: {}]
  %s3 = inlined_call_operand.vmem [shape: f32[1,128], index: 3, kind: input, shape index: {}]
  %s4 = inlined_call_operand.vmem [shape: bf16[128,128], index: 4, kind: output, shape index: {}]
  %s5 = sld [smem:[#allocation0]]
  $region26: #{nconv_forward.5} parent=0
    _
  %s7 = ssub.s32 1, %s5
  %s8 = scalar_select 0, %s7, %s5
  // Predicated region
  $region2: #{nconv_forward.5} parent=0 // pred_check
    _
  $region3: #{nconv_forward.5} parent=0 // pred_check_branch
    %10 = sbr.rel (0) target = $region5
  $region4: #{nconv_forward.5} parent=0 // pred_region
    _
  $region5: #{nconv_forward.5} parent=0 // pred_fallthru
    _
  // Predicated region
  $region6: #{nconv_forward.5} parent=0 // pred_check
    _
  $region7: #{nconv_forward.5} parent=0 // pred_check_branch
    %12 = sbr.rel (0) target = $region9
  $region8: #{nconv_forward.5} parent=0 // pred_region
    _
  $region9: #{nconv_forward.5} parent=0 // pred_fallthru
    _
  // Predicated region
  $region10: #{nconv_forward.5} parent=0 // pred_check
    _
  $region11: #{nconv_forward.5} parent=0 // pred_check_branch
    %14 = sbr.rel (0) target = $region13
  $region12: #{nconv_forward.5} parent=0 // pred_region
    _
  $region13: #{nconv_forward.5} parent=0 // pred_fallthru
    _
  // Predicated region
  $region14: #{nconv_forward.5} parent=0 // pred_check
    _
  $region15: #{nconv_forward.5} parent=0 // pred_check_branch
    %16 = sbr.rel (0) target = $region17
  $region16: #{nconv_forward.5} parent=0 // pred_region
    _
  $region17: #{nconv_forward.5} parent=0 // pred_fallthru
    _
  %v18 = vld [vmem:[%s1] sm:$0xf]
  %v19 = vld [vmem:[%s1 + $0x4] sm:$0xf]
  %v20 = vld [vmem:[%s1 + $0x8] sm:$0xf]
  %v21 = vld [vmem:[%s1 + $0xc] sm:$0xf]
  %v22 = vld [vmem:[%s1 + $0x10] sm:$0xf]
  %v23 = vld [vmem:[%s1 + $0x14] sm:$0xf]
  %v24 = vld [vmem:[%s1 + $0x18] sm:$0xf]
  %v25 = vld [vmem:[%s1 + $0x1c] sm:$0xf]
  %v26 = vld [vmem:[%s1 + $0x20] sm:$0xf]
  %v27 = vld [vmem:[%s1 + $0x24] sm:$0xf]
  %v28 = vld [vmem:[%s1 + $0x28] sm:$0xf]
  %v29 = vld [vmem:[%s1 + $0x2c] sm:$0xf]
  %v30 = vld [vmem:[%s1 + $0x30] sm:$0xf]
  %v31 = vld [vmem:[%s1 + $0x34] sm:$0xf]
  %v32 = vld [vmem:[%s1 + $0x38] sm:$0xf]
  %v33 = vld [vmem:[%s1 + $0x3c] sm:$0xf]
  %v34 = vld [vmem:[%s2] sm:$0xf]
  %v35 = vld [vmem:[%s2 + $0x4] sm:$0xf]
  %v36 = vld [vmem:[%s2 + $0x8] sm:$0xf]
  %v37 = vld [vmem:[%s2 + $0xc] sm:$0xf]
  %v38 = vld [vmem:[%s2 + $0x10] sm:$0xf]
  %v39 = vld [vmem:[%s2 + $0x14] sm:$0xf]
  %v40 = vld [vmem:[%s2 + $0x18] sm:$0xf]
  %v41 = vld [vmem:[%s2 + $0x1c] sm:$0xf]
  %v42 = vld [vmem:[%s2 + $0x20] sm:$0xf]
  %v43 = vld [vmem:[%s2 + $0x24] sm:$0xf]
  %v44 = vld [vmem:[%s2 + $0x28] sm:$0xf]
  %v45 = vld [vmem:[%s2 + $0x2c] sm:$0xf]
  %v46 = vld [vmem:[%s2 + $0x30] sm:$0xf]
  %v47 = vld [vmem:[%s2 + $0x34] sm:$0xf]
  %v48 = vld [vmem:[%s2 + $0x38] sm:$0xf]
  %v49 = vld [vmem:[%s2 + $0x3c] sm:$0xf]
  %v50 = vld [vmem:[%s0] sm:$0xf]
  %v51 = vld [vmem:[%s0 + $0x4] sm:$0xf]
  %v52 = vld [vmem:[%s0 + $0x8] sm:$0xf]
  %v53 = vld [vmem:[%s0 + $0xc] sm:$0xf]
  %v54 = vld [vmem:[%s0 + $0x10] sm:$0xf]
  %v55 = vld [vmem:[%s0 + $0x14] sm:$0xf]
  %v56 = vld [vmem:[%s0 + $0x18] sm:$0xf]
  %v57 = vld [vmem:[%s0 + $0x1c] sm:$0xf]
  %v58 = vld [vmem:[%s0 + $0x20] sm:$0xf]
  %v59 = vld [vmem:[%s0 + $0x24] sm:$0xf]
  %v60 = vld [vmem:[%s0 + $0x28] sm:$0xf]
  %v61 = vld [vmem:[%s0 + $0x2c] sm:$0xf]
  %v62 = vld [vmem:[%s0 + $0x30] sm:$0xf]
  %v63 = vld [vmem:[%s0 + $0x34] sm:$0xf]
  %v64 = vld [vmem:[%s0 + $0x38] sm:$0xf]
  %v65 = vld [vmem:[%s0 + $0x3c] sm:$0xf]
  %v66 = vunpack.c.l.bf16 %v50
  %v67 = vunpack.c.l.bf16 %v51
  %v68 = vunpack.c.l.bf16 %v52
  %v69 = vunpack.c.l.bf16 %v53
  %v70 = vunpack.c.l.bf16 %v54
  %v71 = vunpack.c.l.bf16 %v55
  %v72 = vunpack.c.l.bf16 %v56
  %v73 = vunpack.c.l.bf16 %v57
  %v74 = vunpack.c.l.bf16 %v58
  %v75 = vunpack.c.l.bf16 %v59
  %v76 = vunpack.c.l.bf16 %v60
  %v77 = vunpack.c.l.bf16 %v61
  %v78 = vunpack.c.l.bf16 %v62
  %v79 = vunpack.c.l.bf16 %v63
  %v80 = vunpack.c.l.bf16 %v64
  %v81 = vunpack.c.l.bf16 %v65
  %v98 = vunpack.c.l.b16 %v18
  %v99 = vunpack.c.l.b16 %v19
  %v100 = vunpack.c.l.b16 %v20
  %v101 = vunpack.c.l.b16 %v21
  %v102 = vunpack.c.l.b16 %v22
  %v103 = vunpack.c.l.b16 %v23
  %v104 = vunpack.c.l.b16 %v24
  %v105 = vunpack.c.l.b16 %v25
  %v106 = vunpack.c.l.b16 %v26
  %v107 = vunpack.c.l.b16 %v27
  %v108 = vunpack.c.l.b16 %v28
  %v109 = vunpack.c.l.b16 %v29
  %v110 = vunpack.c.l.b16 %v30
  %v111 = vunpack.c.l.b16 %v31
  %v112 = vunpack.c.l.b16 %v32
  %v113 = vunpack.c.l.b16 %v33
  %v114 = vpack.c.b16 %v99, %v98
  %v115 = vpack.c.b16 %v101, %v100
  %v116 = vpack.c.b16 %v103, %v102
  %v117 = vpack.c.b16 %v105, %v104
  %v118 = vpack.c.b16 %v107, %v106
  %v119 = vpack.c.b16 %v109, %v108
  %v120 = vpack.c.b16 %v111, %v110
  %v121 = vpack.c.b16 %v113, %v112
  %v146 = vunpack.c.l.b16 %v34
  %v147 = vunpack.c.l.b16 %v35
  %v148 = vunpack.c.l.b16 %v36
  %v149 = vunpack.c.l.b16 %v37
  %v150 = vunpack.c.l.b16 %v38
  %v151 = vunpack.c.l.b16 %v39
  %v152 = vunpack.c.l.b16 %v40
  %v153 = vunpack.c.l.b16 %v41
  %v154 = vunpack.c.l.b16 %v42
  %v155 = vunpack.c.l.b16 %v43
  %v156 = vunpack.c.l.b16 %v44
  %v157 = vunpack.c.l.b16 %v45
  %v158 = vunpack.c.l.b16 %v46
  %v159 = vunpack.c.l.b16 %v47
  %v160 = vunpack.c.l.b16 %v48
  %v161 = vunpack.c.l.b16 %v49
  %v162 = vpack.c.b16 %v147, %v146
  %v163 = vpack.c.b16 %v149, %v148
  %v164 = vpack.c.b16 %v151, %v150
  %v165 = vpack.c.b16 %v153, %v152
  %v166 = vpack.c.b16 %v155, %v154
  %v167 = vpack.c.b16 %v157, %v156
  %v168 = vpack.c.b16 %v159, %v158
  %v169 = vpack.c.b16 %v161, %v160
  %178 = vmatprep.subr.bf16.mxu0 0
  %179 = vmatpush1.bf16.msra.mxu0 %v169
  %180 = vmatprep.subr.bf16.mxu0 0
  %181 = vmatpush1.bf16.msra.mxu0 %v168
  %182 = vmatprep.subr.bf16.mxu0 0
  %183 = vmatpush1.bf16.msra.mxu0 %v167
  %184 = vmatprep.subr.bf16.mxu0 0
  %185 = vmatpush1.bf16.msra.mxu0 %v166
  %186 = vmatprep.subr.bf16.mxu0 0
  %187 = vmatpush1.bf16.msra.mxu0 %v165
  %188 = vmatprep.subr.bf16.mxu0 0
  %189 = vmatpush1.bf16.msra.mxu0 %v164
  %190 = vmatprep.subr.bf16.mxu0 0
  %191 = vmatpush1.bf16.msra.mxu0 %v163
  %192 = vmatprep.subr.bf16.mxu0 0
  %193 = vmatpush1.bf16.msra.mxu0 %v162
  %194 = vmatprep.subr.bf16.mxu0 0
  %195 = vmatpush2.bf16.msra.mxu0 0
  %196 = vmatprep.subr.bf16.mxu0 0
  %197 = vmatpush2.bf16.msra.mxu0 0
  %198 = vmatprep.subr.bf16.mxu0 0
  %199 = vmatpush2.bf16.msra.mxu0 0
  %200 = vmatprep.subr.bf16.mxu0 0
  %201 = vmatpush2.bf16.msra.mxu0 0
  %202 = vmatprep.subr.bf16.mxu0 0
  %203 = vmatpush2.bf16.msra.mxu0 0
  %204 = vmatprep.subr.bf16.mxu0 0
  %205 = vmatpush2.bf16.msra.mxu0 0
  %206 = vmatprep.subr.bf16.mxu0 0
  %207 = vmatpush2.bf16.msra.mxu0 0
  %208 = vmatprep.subr.bf16.mxu0 0
  %209 = vmatpush2.bf16.msra.mxu0 0
  %210 = vmatprep.mubr.bf16.mxu0 0
  %211 = vmatmul.mubr.bf16.gmra.mxu0 %v114
  %v212 = vpop.f32.mrf.mxu0
  %v213 = vadd.f32 %v66, %v212
  %v214 = vpop.f32.mrf.mxu0
  %v215 = vpop.f32.mrf.mxu0
  %v216 = vadd.f32 %v67, %v215
  %v217 = vpop.f32.mrf.mxu0
  %218 = vmatprep.mubr.bf16.mxu0 0
  %219 = vmatmul.mubr.bf16.gmra.mxu0 %v115
  %v220 = vpop.f32.mrf.mxu0
  %v221 = vadd.f32 %v68, %v220
  %v222 = vpop.f32.mrf.mxu0
  %v223 = vpop.f32.mrf.mxu0
  %v224 = vadd.f32 %v69, %v223
  %v225 = vpop.f32.mrf.mxu0
  %226 = vmatprep.mubr.bf16.mxu0 0
  %227 = vmatmul.mubr.bf16.gmra.mxu0 %v116
  %v228 = vpop.f32.mrf.mxu0
  %v229 = vadd.f32 %v70, %v228
  %v230 = vpop.f32.mrf.mxu0
  %v231 = vpop.f32.mrf.mxu0
  %v232 = vadd.f32 %v71, %v231
  %v233 = vpop.f32.mrf.mxu0
  %234 = vmatprep.mubr.bf16.mxu0 0
  %235 = vmatmul.mubr.bf16.gmra.mxu0 %v117
  %v236 = vpop.f32.mrf.mxu0
  %v237 = vadd.f32 %v72, %v236
  %v238 = vpop.f32.mrf.mxu0
  %v239 = vpop.f32.mrf.mxu0
  %v240 = vadd.f32 %v73, %v239
  %v241 = vpop.f32.mrf.mxu0
  %242 = vmatprep.mubr.bf16.mxu0 0
  %243 = vmatmul.mubr.bf16.gmra.mxu0 %v118
  %v244 = vpop.f32.mrf.mxu0
  %v245 = vadd.f32 %v74, %v244
  %v246 = vpop.f32.mrf.mxu0
  %v247 = vpop.f32.mrf.mxu0
  %v248 = vadd.f32 %v75, %v247
  %v249 = vpop.f32.mrf.mxu0
  %250 = vmatprep.mubr.bf16.mxu0 0
  %251 = vmatmul.mubr.bf16.gmra.mxu0 %v119
  %v252 = vpop.f32.mrf.mxu0
  %v253 = vadd.f32 %v76, %v252
  %v254 = vpop.f32.mrf.mxu0
  %v255 = vpop.f32.mrf.mxu0
  %v256 = vadd.f32 %v77, %v255
  %v257 = vpop.f32.mrf.mxu0
  %258 = vmatprep.mubr.bf16.mxu0 0
  %259 = vmatmul.mubr.bf16.gmra.mxu0 %v120
  %v260 = vpop.f32.mrf.mxu0
  %v261 = vadd.f32 %v78, %v260
  %v262 = vpop.f32.mrf.mxu0
  %v263 = vpop.f32.mrf.mxu0
  %v264 = vadd.f32 %v79, %v263
  %v265 = vpop.f32.mrf.mxu0
  %266 = vmatprep.mubr.bf16.mxu0 0
  %267 = vmatmul.mubr.bf16.gmra.mxu0 %v121
  %v268 = vpop.f32.mrf.mxu0
  %v269 = vadd.f32 %v80, %v268
  %v270 = vpop.f32.mrf.mxu0
  %v271 = vpop.f32.mrf.mxu0
  %v272 = vadd.f32 %v81, %v271
  %v273 = vpop.f32.mrf.mxu0
  %274 = vdwg.mxu0
  %v275 = vld [vmem:[%s3] sm:$0x1]
  %v277 = vlaneseq
  %v278 = vshrl.u32 %v277, 7
  %v279 = vsub.s32 0, %v278
  %v280 = vrot.slane %v275, %v279
  %v282 = vadd.f32 %v213, %v280
  %v283 = vadd.f32 %v216, %v280
  %v284 = vadd.f32 %v221, %v280
  %v285 = vadd.f32 %v224, %v280
  %v286 = vadd.f32 %v229, %v280
  %v287 = vadd.f32 %v232, %v280
  %v288 = vadd.f32 %v237, %v280
  %v289 = vadd.f32 %v240, %v280
  %v290 = vadd.f32 %v245, %v280
  %v291 = vadd.f32 %v248, %v280
  %v292 = vadd.f32 %v253, %v280
  %v293 = vadd.f32 %v256, %v280
  %v294 = vadd.f32 %v261, %v280
  %v295 = vadd.f32 %v264, %v280
  %v296 = vadd.f32 %v269, %v280
  %v297 = vadd.f32 %v272, %v280
  %v298 = vmax.f32 %v282, 0.0
  %v299 = vmax.f32 %v283, 0.0
  %v300 = vmax.f32 %v284, 0.0
  %v301 = vmax.f32 %v285, 0.0
  %v302 = vmax.f32 %v286, 0.0
  %v303 = vmax.f32 %v287, 0.0
  %v304 = vmax.f32 %v288, 0.0
  %v305 = vmax.f32 %v289, 0.0
  %v306 = vmax.f32 %v290, 0.0
  %v307 = vmax.f32 %v291, 0.0
  %v308 = vmax.f32 %v292, 0.0
  %v309 = vmax.f32 %v293, 0.0
  %v310 = vmax.f32 %v294, 0.0
  %v311 = vmax.f32 %v295, 0.0
  %v312 = vmax.f32 %v296, 0.0
  %v313 = vmax.f32 %v297, 0.0
  %v314 = vpack.c.bf16 %v299, %v298
  %v315 = vpack.c.bf16 %v301, %v300
  %v316 = vpack.c.bf16 %v303, %v302
  %v317 = vpack.c.bf16 %v305, %v304
  %v318 = vpack.c.bf16 %v307, %v306
  %v319 = vpack.c.bf16 %v309, %v308
  %v320 = vpack.c.bf16 %v311, %v310
  %v321 = vpack.c.bf16 %v313, %v312
  %v330 = vunpack.c.l.b16 %v314
  %v331 = vunpack.c.h.b16 %v314
  %v332 = vunpack.c.l.b16 %v315
  %v333 = vunpack.c.h.b16 %v315
  %v334 = vunpack.c.l.b16 %v316
  %v335 = vunpack.c.h.b16 %v316
  %v336 = vunpack.c.l.b16 %v317
  %v337 = vunpack.c.h.b16 %v317
  %v338 = vunpack.c.l.b16 %v318
  %v339 = vunpack.c.h.b16 %v318
  %v340 = vunpack.c.l.b16 %v319
  %v341 = vunpack.c.h.b16 %v319
  %v342 = vunpack.c.l.b16 %v320
  %v343 = vunpack.c.h.b16 %v320
  %v344 = vunpack.c.l.b16 %v321
  %v345 = vunpack.c.h.b16 %v321
  %v346 = vpack.c.b16 %v330, %v330
  %v347 = vpack.c.b16 %v331, %v331
  %v348 = vpack.c.b16 %v332, %v332
  %v349 = vpack.c.b16 %v333, %v333
  %v350 = vpack.c.b16 %v334, %v334
  %v351 = vpack.c.b16 %v335, %v335
  %v352 = vpack.c.b16 %v336, %v336
  %v353 = vpack.c.b16 %v337, %v337
  %v354 = vpack.c.b16 %v338, %v338
  %v355 = vpack.c.b16 %v339, %v339
  %v356 = vpack.c.b16 %v340, %v340
  %v357 = vpack.c.b16 %v341, %v341
  %v358 = vpack.c.b16 %v342, %v342
  %v359 = vpack.c.b16 %v343, %v343
  %v360 = vpack.c.b16 %v344, %v344
  %v361 = vpack.c.b16 %v345, %v345
  %378 = vst [vmem:[%s4] sm:$0xf] %v346
  %379 = vst [vmem:[%s4 + $0x4] sm:$0xf] %v347
  %380 = vst [vmem:[%s4 + $0x8] sm:$0xf] %v348
  %381 = vst [vmem:[%s4 + $0xc] sm:$0xf] %v349
  %382 = vst [vmem:[%s4 + $0x10] sm:$0xf] %v350
  %383 = vst [vmem:[%s4 + $0x14] sm:$0xf] %v351
  %384 = vst [vmem:[%s4 + $0x18] sm:$0xf] %v352
  %385 = vst [vmem:[%s4 + $0x1c] sm:$0xf] %v353
  %386 = vst [vmem:[%s4 + $0x20] sm:$0xf] %v354
  %387 = vst [vmem:[%s4 + $0x24] sm:$0xf] %v355
  %388 = vst [vmem:[%s4 + $0x28] sm:$0xf] %v356
  %389 = vst [vmem:[%s4 + $0x2c] sm:$0xf] %v357
  %390 = vst [vmem:[%s4 + $0x30] sm:$0xf] %v358
  %391 = vst [vmem:[%s4 + $0x34] sm:$0xf] %v359
  %392 = vst [vmem:[%s4 + $0x38] sm:$0xf] %v360
  %393 = vst [vmem:[%s4 + $0x3c] sm:$0xf] %v361
  // Predicated region
  $region18: #{nconv_forward.5} parent=0 // pred_check
    _
  $region19: #{nconv_forward.5} parent=0 // pred_check_branch
    %395 = sbr.rel (0) target = $region21
  $region20: #{nconv_forward.5} parent=0 // pred_region
    _
  $region21: #{nconv_forward.5} parent=0 // pred_fallthru
    _
  // Predicated region
  $region22: #{nconv_forward.5} parent=0 // pred_check
    _
  $region23: #{nconv_forward.5} parent=0 // pred_check_branch
    %397 = sbr.rel (0) target = $region25
  $region24: #{nconv_forward.5} parent=0 // pred_region
    _
  $region25: #{nconv_forward.5} parent=0 // pred_fallthru
    _

// kernel: nconv_forward.6
$region0: #{nconv_forward.6}
  #allocation0 [shape = 'u32[]', space=smem, size = 0x4, offset = 0x4, fixed_abs, tag = 'smem constant byte address 0x4 - core index']
  #allocation1 [shape = 'u32[144,128]{1,0:T(1,128)}', space=vmem, size = 0x12000, scoped, tag = 'internal scratch']
  %s0 = inlined_call_operand.vmem [shape: bf16[8,128], index: 0, kind: input, shape index: {}]
  %s1 = inlined_call_operand.vmem [shape: bf16[128,128], index: 1, kind: input, shape index: {}]
  %s2 = inlined_call_operand.vmem [shape: f32[1,128], index: 2, kind: input, shape index: {}]
  %s3 = inlined_call_operand.vmem [shape: bf16[8,128], index: 3, kind: output, shape index: {}]
  %s4 = sld [smem:[#allocation0]]
  $region22: #{nconv_forward.6} parent=0
    _
  %s6 = ssub.s32 1, %s4
  %s7 = scalar_select 0, %s6, %s4
  // Predicated region
  $region2: #{nconv_forward.6} parent=0 // pred_check
    _
  $region3: #{nconv_forward.6} parent=0 // pred_check_branch
    %9 = sbr.rel (0) target = $region5
  $region4: #{nconv_forward.6} parent=0 // pred_region
    _
  $region5: #{nconv_forward.6} parent=0 // pred_fallthru
    _
  // Predicated region
  $region6: #{nconv_forward.6} parent=0 // pred_check
    _
  $region7: #{nconv_forward.6} parent=0 // pred_check_branch
    %11 = sbr.rel (0) target = $region9
  $region8: #{nconv_forward.6} parent=0 // pred_region
    _
  $region9: #{nconv_forward.6} parent=0 // pred_fallthru
    _
  // Predicated region
  $region10: #{nconv_forward.6} parent=0 // pred_check
    _
  $region11: #{nconv_forward.6} parent=0 // pred_check_branch
    %13 = sbr.rel (0) target = $region13
  $region12: #{nconv_forward.6} parent=0 // pred_region
    _
  $region13: #{nconv_forward.6} parent=0 // pred_fallthru
    _
  %v15 = vld [vmem:[%s0] sm:$0xf]
  %v16 = vld [vmem:[%s1] sm:$0xf]
  %v17 = vld [vmem:[%s1 + $0x4] sm:$0xf]
  %v18 = vld [vmem:[%s1 + $0x8] sm:$0xf]
  %v19 = vld [vmem:[%s1 + $0xc] sm:$0xf]
  %v20 = vld [vmem:[%s1 + $0x10] sm:$0xf]
  %v21 = vld [vmem:[%s1 + $0x14] sm:$0xf]
  %v22 = vld [vmem:[%s1 + $0x18] sm:$0xf]
  %v23 = vld [vmem:[%s1 + $0x1c] sm:$0xf]
  %v24 = vld [vmem:[%s1 + $0x20] sm:$0xf]
  %v25 = vld [vmem:[%s1 + $0x24] sm:$0xf]
  %v26 = vld [vmem:[%s1 + $0x28] sm:$0xf]
  %v27 = vld [vmem:[%s1 + $0x2c] sm:$0xf]
  %v28 = vld [vmem:[%s1 + $0x30] sm:$0xf]
  %v29 = vld [vmem:[%s1 + $0x34] sm:$0xf]
  %v30 = vld [vmem:[%s1 + $0x38] sm:$0xf]
  %v31 = vld [vmem:[%s1 + $0x3c] sm:$0xf]
  %v32 = vld [vmem:[%s2] sm:$0x1]
  %v34 = vlaneseq
  %v35 = vshrl.u32 %v34, 7
  %v36 = vsub.s32 0, %v35
  %v37 = vrot.slane %v32, %v36
  %v55 = vunpack.c.l.b16 %v16
  %v56 = vunpack.c.l.b16 %v17
  %v57 = vunpack.c.l.b16 %v18
  %v58 = vunpack.c.l.b16 %v19
  %v59 = vunpack.c.l.b16 %v20
  %v60 = vunpack.c.l.b16 %v21
  %v61 = vunpack.c.l.b16 %v22
  %v62 = vunpack.c.l.b16 %v23
  %v63 = vunpack.c.l.b16 %v24
  %v64 = vunpack.c.l.b16 %v25
  %v65 = vunpack.c.l.b16 %v26
  %v66 = vunpack.c.l.b16 %v27
  %v67 = vunpack.c.l.b16 %v28
  %v68 = vunpack.c.l.b16 %v29
  %v69 = vunpack.c.l.b16 %v30
  %v70 = vunpack.c.l.b16 %v31
  %v71 = vpack.c.b16 %v56, %v55
  %v72 = vpack.c.b16 %v58, %v57
  %v73 = vpack.c.b16 %v60, %v59
  %v74 = vpack.c.b16 %v62, %v61
  %v75 = vpack.c.b16 %v64, %v63
  %v76 = vpack.c.b16 %v66, %v65
  %v77 = vpack.c.b16 %v68, %v67
  %v78 = vpack.c.b16 %v70, %v69
  %87 = vmatprep.subr.bf16.mxu0 0
  %88 = vmatpush1.bf16.msra.mxu0 %v78
  %89 = vmatprep.subr.bf16.mxu0 0
  %90 = vmatpush1.bf16.msra.mxu0 %v77
  %91 = vmatprep.subr.bf16.mxu0 0
  %92 = vmatpush1.bf16.msra.mxu0 %v76
  %93 = vmatprep.subr.bf16.mxu0 0
  %94 = vmatpush1.bf16.msra.mxu0 %v75
  %95 = vmatprep.subr.bf16.mxu0 0
  %96 = vmatpush1.bf16.msra.mxu0 %v74
  %97 = vmatprep.subr.bf16.mxu0 0
  %98 = vmatpush1.bf16.msra.mxu0 %v73
  %99 = vmatprep.subr.bf16.mxu0 0
  %100 = vmatpush1.bf16.msra.mxu0 %v72
  %101 = vmatprep.subr.bf16.mxu0 0
  %102 = vmatpush1.bf16.msra.mxu0 %v71
  %103 = vmatprep.subr.bf16.mxu0 0
  %104 = vmatpush2.bf16.msra.mxu0 0
  %105 = vmatprep.subr.bf16.mxu0 0
  %106 = vmatpush2.bf16.msra.mxu0 0
  %107 = vmatprep.subr.bf16.mxu0 0
  %108 = vmatpush2.bf16.msra.mxu0 0
  %109 = vmatprep.subr.bf16.mxu0 0
  %110 = vmatpush2.bf16.msra.mxu0 0
  %111 = vmatprep.subr.bf16.mxu0 0
  %112 = vmatpush2.bf16.msra.mxu0 0
  %113 = vmatprep.subr.bf16.mxu0 0
  %114 = vmatpush2.bf16.msra.mxu0 0
  %115 = vmatprep.subr.bf16.mxu0 0
  %116 = vmatpush2.bf16.msra.mxu0 0
  %117 = vmatprep.subr.bf16.mxu0 0
  %118 = vmatpush2.bf16.msra.mxu0 0
  %119 = vmatprep.mubr.bf16.mxu0 0
  %120 = vmatmul.mubr.bf16.gmra.mxu0 %v15
  %v121 = vpop.f32.mrf.mxu0
  %v122 = vadd.f32 %v37, %v121
  %v123 = vpop.f32.mrf.mxu0
  %v124 = vpop.f32.mrf.mxu0
  %v125 = vpop.f32.mrf.mxu0
  %126 = vdwg.mxu0
  %v127 = vmax.f32 %v122, 0.0
  %v128 = vpack.c.bf16 %v127, %v127
  %129 = vst [vmem:[%s3] sm:$0xf] %v128
  // Predicated region
  $region14: #{nconv_forward.6} parent=0 // pred_check
    _
  $region15: #{nconv_forward.6} parent=0 // pred_check_branch
    %131 = sbr.rel (0) target = $region17
  $region16: #{nconv_forward.6} parent=0 // pred_region
    _
  $region17: #{nconv_forward.6} parent=0 // pred_fallthru
    _
  // Predicated region
  $region18: #{nconv_forward.6} parent=0 // pred_check
    _
  $region19: #{nconv_forward.6} parent=0 // pred_check_branch
    %133 = sbr.rel (0) target = $region21
  $region20: #{nconv_forward.6} parent=0 // pred_region
    _
  $region21: #{nconv_forward.6} parent=0 // pred_fallthru
    _

// kernel: nconv_forward.7
$region0: #{nconv_forward.7}
  #allocation0 [shape = 'u32[]', space=smem, size = 0x4, offset = 0x4, fixed_abs, tag = 'smem constant byte address 0x4 - core index']
  #allocation1 [shape = 'u32[144,128]{1,0:T(1,128)}', space=vmem, size = 0x12000, scoped, tag = 'internal scratch']
  #allocation2 [shape = 'f32[16,128]{1,0:T(8,128)}', space=vmem, size = 0x2000, scoped, tag = 'scratch operand']
  #allocation3 [shape = 's32[1]{0}', space=sflag, size = 0x4, scoped, tag = 'scoped memory for nconv_forward.7']
  #allocation4 [shape = 'u8[512]{0}', space=smem, size = 0x200, scoped, tag = 'prefetched SMEM operand 0']
  #allocation5 [shape = 'u8[512]{0}', space=smem, size = 0x200, scoped, tag = 'prefetched SMEM operand 1']
  #allocation6 [shape = 'u8[512]{0}', space=smem, size = 0x200, scoped, tag = 'prefetched SMEM operand 2']
  %s0 = inlined_call_operand.vmem [shape: s32[2], index: 0, kind: input, shape index: {}]
  %s1 = inlined_call_operand.vmem [shape: s32[2], index: 1, kind: input, shape index: {}]
  %s2 = inlined_call_operand.vmem [shape: s32[2], index: 2, kind: input, shape index: {}]
  %s3 = inlined_call_operand.vmem [shape: s32[1,128], index: 3, kind: input, shape index: {}]
  %s4 = inlined_call_operand.vmem [shape: bf16[128,128], index: 4, kind: input, shape index: {}]
  %s5 = inlined_call_operand.vmem [shape: bf16[16,128], index: 5, kind: input, shape index: {}]
  %s6 = inlined_call_operand.vmem [shape: bf16[16,128], index: 6, kind: input, shape index: {}]
  %s7 = inlined_call_operand.vmem [shape: f32[2], index: 7, kind: input, shape index: {}]
  %s8 = inlined_call_operand.vmem [shape: bf16[128,128], index: 8, kind: input, shape index: {}]
  %s9 = inlined_call_operand.vmem [shape: f32[1,128], index: 9, kind: input, shape index: {}]
  %s10 = inlined_call_operand.vmem [shape: bf16[128,128], index: 10, kind: input, shape index: {}]
  %s11 = inlined_call_operand.vmem [shape: f32[1,128], index: 11, kind: input, shape index: {}]
  %s12 = inlined_call_operand.vmem [shape: bf16[256,128], index: 12, kind: input, shape index: {}]
  %s13 = inlined_call_operand.vmem [shape: f32[1,128], index: 13, kind: input, shape index: {}]
  %s14 = inlined_call_operand.hbm [shape: f32[16,128], index: 14, kind: output, shape index: {}]
  %s15 = sld [smem:[#allocation0]]
  $region93: #{nconv_forward.7} parent=0
    _
  %s17 = ssub.s32 1, %s15
  %s18 = scalar_select 0, %s17, %s15
  %s19 = sshll.u32 %s0, 4
  %s20 = int_to_ptr.vmem [resolvable:$true] %s19
  %22 = dma.vmem_to_smem %s20, 16, [#allocation4], [#allocation3]
  %s23 = sshll.u32 %s1, 4
  %s24 = int_to_ptr.vmem [resolvable:$true] %s23
  %26 = dma.vmem_to_smem %s24, 16, [#allocation5], [#allocation3]
  %s27 = sshll.u32 %s2, 4
  %s28 = int_to_ptr.vmem [resolvable:$true] %s27
  %30 = dma.vmem_to_smem %s28, 16, [#allocation6], [#allocation3]
  %31 = dma.done [#allocation3], 48
  %32 = sfence
  $region1: #{nconv_forward.7} parent=0
    #allocation7 [shape = 'u8[512]{0}', space=smem, size = 0x200, scoped, tag = 'input window, operand 7, single buffered']
    #allocation8 [shape = 's32[2]{0}', space=sflag, size = 0x8, scoped, tag = 'scoped memory for nconv_forward.7']
    #allocation9 [shape = 's32[2]{0}', space=sflag, size = 0x8, scoped, tag = 'scoped memory for nconv_forward.7']
    #allocation10 [shape = 'u8[16384]{0}', space=vmem, size = 0x4000, scoped, tag = 'output window, operand 0']
    %33 = vsyncpa [#allocation9], 0
    %34 = vsyncpa [#allocation8], 0
    %s35 = scalar_lea.sflag [#allocation8], 1
    %36 = vsyncpa %s35, 0
    loop: start=0, step=1, limit=4
    $region2: #{nconv_forward.7} parent=1 // loop_pre_header
      _
    $region3: #{nconv_forward.7} parent=1 // loop_header
      %s38 = sphi 0, %s42
      %p39 = scmp.ge.s32.totalorder %s38, 4
      %s50 = sphi 0, %s52
      %s53 = sphi 0, %s50
      %s54 = sphi 0, %s53
      %s70 = sphi 0, %s54
      %s78 = sphi 0, %s80
      %s81 = sphi 0, %s78
      %s82 = sphi 0, %s81
      %s98 = sphi 0, %s82
      %s106 = sphi 0, %s108
      %s109 = sphi 0, %s106
      %s110 = sphi 0, %s109
      %s126 = sphi 0, %s110
      %s134 = sphi 0, %s136
      %s137 = sphi 0, %s134
      %s138 = sphi 0, %s137
      %s154 = sphi 0, %s138
      %s158 = sphi 0, %s158
      %s160 = sphi 0, %s158
      %s161 = sphi 0, %s160
      %s175 = sphi 0, %s161
      %s179 = sphi 0, %s179
      %s181 = sphi 0, %s179
      %s182 = sphi 0, %s181
      %s196 = sphi 0, %s182
      %s200 = sphi 0, %s200
      %s202 = sphi 0, %s200
      %s203 = sphi 0, %s202
      %s217 = sphi 0, %s203
      %s221 = sphi 0, %s221
      %s223 = sphi 0, %s221
      %s224 = sphi 0, %s223
      %s238 = sphi 0, %s224
      %s242 = sphi 0, %s242
      %s244 = sphi 0, %s242
      %s245 = sphi 0, %s244
      %s259 = sphi 0, %s245
      %s263 = sphi 0, %s263
      %s265 = sphi 0, %s263
      %s266 = sphi 0, %s265
      %s280 = sphi 0, %s266
      %s284 = sphi 0, %s284
      %s286 = sphi 0, %s284
      %s287 = sphi 0, %s286
      %s301 = sphi 0, %s287
      %s309 = sphi 0, %s311
      %s312 = sphi 0, %s309
      %s313 = sphi 0, %s312
      %s329 = sphi 0, %s313
    $region4: #{nconv_forward.7} parent=1 // loop_header_branch
      %41 = sbr.rel (%p39) target = $region8
    $region5: #{nconv_forward.7} parent=1 // loop_body
      %s43 = ssub.s32 %s38, 1
      %s44 = ssub.s32 %s38, 2
      %s45 = sadd.s32 %s38, 1
      %s46 = sld [smem:[#allocation5 + %s38]]
      %s47 = sld [smem:[#allocation5 + %s45]]
      %s48 = ssub.s32 %s46, %s47
      %p49 = scmp.eq.s32.totalorder %s48, 0
      %s51 = sadd.s32 %s50, 1
      %s52 = scalar_select %p49, %s50, %s51
      %p55 = pneg %p49
      %p56 = scmp.eq.s32.totalorder %s38, 1
      %p57 = por %p55, %p56
      %p58 = scmp.ne.s32.totalorder %s50, %s53
      %p59 = scmp.eq.s32.totalorder %s38, 0
      %p60 = por %p58, %p59
      %p61 = scmp.ne.s32.totalorder %s50, %s53
      %p62 = scmp.eq.s32.totalorder %s43, 1
      %p63 = por %p61, %p62
      %p64 = scmp.ne.s32.totalorder %s53, %s54
      %p65 = scmp.eq.s32.totalorder %s43, 0
      %p66 = por %p64, %p65
      %p67 = scmp.ne.s32.totalorder %s53, %s54
      %p68 = scmp.eq.s32.totalorder %s44, 1
      %p69 = por %p67, %p68
      %p71 = scmp.ne.s32.totalorder %s54, %s70
      %p72 = scmp.eq.s32.totalorder %s44, 0
      %p73 = por %p71, %p72
      %s74 = sld [smem:[#allocation5 + %s38]]
      %s75 = sld [smem:[#allocation5 + %s45]]
      %s76 = ssub.s32 %s74, %s75
      %p77 = scmp.eq.s32.totalorder %s76, 0
      %s79 = sadd.s32 %s78, 1
      %s80 = scalar_select %p77, %s78, %s79
      %p83 = pneg %p77
      %p84 = scmp.eq.s32.totalorder %s38, 1
      %p85 = por %p83, %p84
      %p86 = scmp.ne.s32.totalorder %s78, %s81
      %p87 = scmp.eq.s32.totalorder %s38, 0
      %p88 = por %p86, %p87
      %p89 = scmp.ne.s32.totalorder %s78, %s81
      %p90 = scmp.eq.s32.totalorder %s43, 1
      %p91 = por %p89, %p90
      %p92 = scmp.ne.s32.totalorder %s81, %s82
      %p93 = scmp.eq.s32.totalorder %s43, 0
      %p94 = por %p92, %p93
      %p95 = scmp.ne.s32.totalorder %s81, %s82
      %p96 = scmp.eq.s32.totalorder %s44, 1
      %p97 = por %p95, %p96
      %p99 = scmp.ne.s32.totalorder %s82, %s98
      %p100 = scmp.eq.s32.totalorder %s44, 0
      %p101 = por %p99, %p100
      %s102 = sld [smem:[#allocation4 + %s38]]
      %s103 = sld [smem:[#allocation4 + %s45]]
      %s104 = ssub.s32 %s102, %s103
      %p105 = scmp.eq.s32.totalorder %s104, 0
      %s107 = sadd.s32 %s106, 1
      %s108 = scalar_select %p105, %s106, %s107
      %p111 = pneg %p105
      %p112 = scmp.eq.s32.totalorder %s38, 1
      %p113 = por %p111, %p112
      %p114 = scmp.ne.s32.totalorder %s106, %s109
      %p115 = scmp.eq.s32.totalorder %s38, 0
      %p116 = por %p114, %p115
      %p117 = scmp.ne.s32.totalorder %s106, %s109
      %p118 = scmp.eq.s32.totalorder %s43, 1
      %p119 = por %p117, %p118
      %p120 = scmp.ne.s32.totalorder %s109, %s110
      %p121 = scmp.eq.s32.totalorder %s43, 0
      %p122 = por %p120, %p121
      %p123 = scmp.ne.s32.totalorder %s109, %s110
      %p124 = scmp.eq.s32.totalorder %s44, 1
      %p125 = por %p123, %p124
      %p127 = scmp.ne.s32.totalorder %s110, %s126
      %p128 = scmp.eq.s32.totalorder %s44, 0
      %p129 = por %p127, %p128
      %s130 = sld [smem:[#allocation4 + %s38]]
      %s131 = sld [smem:[#allocation4 + %s45]]
      %s132 = ssub.s32 %s130, %s131
      %p133 = scmp.eq.s32.totalorder %s132, 0
      %s135 = sadd.s32 %s134, 1
      %s136 = scalar_select %p133, %s134, %s135
      %p139 = pneg %p133
      %p140 = scmp.eq.s32.totalorder %s38, 1
      %p141 = por %p139, %p140
      %p142 = scmp.ne.s32.totalorder %s134, %s137
      %p143 = scmp.eq.s32.totalorder %s38, 0
      %p144 = por %p142, %p143
      %p145 = scmp.ne.s32.totalorder %s134, %s137
      %p146 = scmp.eq.s32.totalorder %s43, 1
      %p147 = por %p145, %p146
      %p148 = scmp.ne.s32.totalorder %s137, %s138
      %p149 = scmp.eq.s32.totalorder %s43, 0
      %p150 = por %p148, %p149
      %p151 = scmp.ne.s32.totalorder %s137, %s138
      %p152 = scmp.eq.s32.totalorder %s44, 1
      %p153 = por %p151, %p152
      %p155 = scmp.ne.s32.totalorder %s138, %s154
      %p156 = scmp.eq.s32.totalorder %s44, 0
      %p157 = por %p155, %p156
      %s159 = sadd.s32 %s158, 1
      %p162 = scmp.eq.s32.totalorder %s38, 1
      %p163 = scmp.ne.s32.totalorder %s158, %s160
      %p164 = scmp.eq.s32.totalorder %s38, 0
      %p165 = por %p163, %p164
      %p166 = scmp.ne.s32.totalorder %s158, %s160
      %p167 = scmp.eq.s32.totalorder %s43, 1
      %p168 = por %p166, %p167
      %p169 = scmp.ne.s32.totalorder %s160, %s161
      %p170 = scmp.eq.s32.totalorder %s43, 0
      %p171 = por %p169, %p170
      %p172 = scmp.ne.s32.totalorder %s160, %s161
      %p173 = scmp.eq.s32.totalorder %s44, 1
      %p174 = por %p172, %p173
      %p176 = scmp.ne.s32.totalorder %s161, %s175
      %p177 = scmp.eq.s32.totalorder %s44, 0
      %p178 = por %p176, %p177
      %s180 = sadd.s32 %s179, 1
      %p183 = scmp.eq.s32.totalorder %s38, 1
      %p184 = scmp.ne.s32.totalorder %s179, %s181
      %p185 = scmp.eq.s32.totalorder %s38, 0
      %p186 = por %p184, %p185
      %p187 = scmp.ne.s32.totalorder %s179, %s181
      %p188 = scmp.eq.s32.totalorder %s43, 1
      %p189 = por %p187, %p188
      %p190 = scmp.ne.s32.totalorder %s181, %s182
      %p191 = scmp.eq.s32.totalorder %s43, 0
      %p192 = por %p190, %p191
      %p193 = scmp.ne.s32.totalorder %s181, %s182
      %p194 = scmp.eq.s32.totalorder %s44, 1
      %p195 = por %p193, %p194
      %p197 = scmp.ne.s32.totalorder %s182, %s196
      %p198 = scmp.eq.s32.totalorder %s44, 0
      %p199 = por %p197, %p198
      %s201 = sadd.s32 %s200, 1
      %p204 = scmp.eq.s32.totalorder %s38, 1
      %p205 = scmp.ne.s32.totalorder %s200, %s202
      %p206 = scmp.eq.s32.totalorder %s38, 0
      %p207 = por %p205, %p206
      %p208 = scmp.ne.s32.totalorder %s200, %s202
      %p209 = scmp.eq.s32.totalorder %s43, 1
      %p210 = por %p208, %p209
      %p211 = scmp.ne.s32.totalorder %s202, %s203
      %p212 = scmp.eq.s32.totalorder %s43, 0
      %p213 = por %p211, %p212
      %p214 = scmp.ne.s32.totalorder %s202, %s203
      %p215 = scmp.eq.s32.totalorder %s44, 1
      %p216 = por %p214, %p215
      %p218 = scmp.ne.s32.totalorder %s203, %s217
      %p219 = scmp.eq.s32.totalorder %s44, 0
      %p220 = por %p218, %p219
      %s222 = sadd.s32 %s221, 1
      %p225 = scmp.eq.s32.totalorder %s38, 1
      %p226 = scmp.ne.s32.totalorder %s221, %s223
      %p227 = scmp.eq.s32.totalorder %s38, 0
      %p228 = por %p226, %p227
      %p229 = scmp.ne.s32.totalorder %s221, %s223
      %p230 = scmp.eq.s32.totalorder %s43, 1
      %p231 = por %p229, %p230
      %p232 = scmp.ne.s32.totalorder %s223, %s224
      %p233 = scmp.eq.s32.totalorder %s43, 0
      %p234 = por %p232, %p233
      %p235 = scmp.ne.s32.totalorder %s223, %s224
      %p236 = scmp.eq.s32.totalorder %s44, 1
      %p237 = por %p235, %p236
      %p239 = scmp.ne.s32.totalorder %s224, %s238
      %p240 = scmp.eq.s32.totalorder %s44, 0
      %p241 = por %p239, %p240
      %s243 = sadd.s32 %s242, 1
      %p246 = scmp.eq.s32.totalorder %s38, 1
      %p247 = scmp.ne.s32.totalorder %s242, %s244
      %p248 = scmp.eq.s32.totalorder %s38, 0
      %p249 = por %p247, %p248
      %p250 = scmp.ne.s32.totalorder %s242, %s244
      %p251 = scmp.eq.s32.totalorder %s43, 1
      %p252 = por %p250, %p251
      %p253 = scmp.ne.s32.totalorder %s244, %s245
      %p254 = scmp.eq.s32.totalorder %s43, 0
      %p255 = por %p253, %p254
      %p256 = scmp.ne.s32.totalorder %s244, %s245
      %p257 = scmp.eq.s32.totalorder %s44, 1
      %p258 = por %p256, %p257
      %p260 = scmp.ne.s32.totalorder %s245, %s259
      %p261 = scmp.eq.s32.totalorder %s44, 0
      %p262 = por %p260, %p261
      %s264 = sadd.s32 %s263, 1
      %p267 = scmp.eq.s32.totalorder %s38, 1
      %p268 = scmp.ne.s32.totalorder %s263, %s265
      %p269 = scmp.eq.s32.totalorder %s38, 0
      %p270 = por %p268, %p269
      %p271 = scmp.ne.s32.totalorder %s263, %s265
      %p272 = scmp.eq.s32.totalorder %s43, 1
      %p273 = por %p271, %p272
      %p274 = scmp.ne.s32.totalorder %s265, %s266
      %p275 = scmp.eq.s32.totalorder %s43, 0
      %p276 = por %p274, %p275
      %p277 = scmp.ne.s32.totalorder %s265, %s266
      %p278 = scmp.eq.s32.totalorder %s44, 1
      %p279 = por %p277, %p278
      %p281 = scmp.ne.s32.totalorder %s266, %s280
      %p282 = scmp.eq.s32.totalorder %s44, 0
      %p283 = por %p281, %p282
      %s285 = sadd.s32 %s284, 1
      %p288 = scmp.eq.s32.totalorder %s38, 1
      %p289 = scmp.ne.s32.totalorder %s284, %s286
      %p290 = scmp.eq.s32.totalorder %s38, 0
      %p291 = por %p289, %p290
      %p292 = scmp.ne.s32.totalorder %s284, %s286
      %p293 = scmp.eq.s32.totalorder %s43, 1
      %p294 = por %p292, %p293
      %p295 = scmp.ne.s32.totalorder %s286, %s287
      %p296 = scmp.eq.s32.totalorder %s43, 0
      %p297 = por %p295, %p296
      %p298 = scmp.ne.s32.totalorder %s286, %s287
      %p299 = scmp.eq.s32.totalorder %s44, 1
      %p300 = por %p298, %p299
      %p302 = scmp.ne.s32.totalorder %s287, %s301
      %p303 = scmp.eq.s32.totalorder %s44, 0
      %p304 = por %p302, %p303
      %s305 = sld [smem:[#allocation4 + %s38]]
      %s306 = sld [smem:[#allocation4 + %s45]]
      %s307 = ssub.s32 %s305, %s306
      %p308 = scmp.eq.s32.totalorder %s307, 0
      %s310 = sadd.s32 %s309, 1
      %s311 = scalar_select %p308, %s309, %s310
      %p314 = pneg %p308
      %p315 = scmp.eq.s32.totalorder %s38, 1
      %p316 = por %p314, %p315
      %p317 = scmp.ne.s32.totalorder %s309, %s312
      %p318 = scmp.eq.s32.totalorder %s38, 0
      %p319 = por %p317, %p318
      %p320 = scmp.ne.s32.totalorder %s309, %s312
      %p321 = scmp.eq.s32.totalorder %s43, 1
      %p322 = por %p320, %p321
      %p323 = scmp.ne.s32.totalorder %s312, %s313
      %p324 = scmp.eq.s32.totalorder %s43, 0
      %p325 = por %p323, %p324
      %p326 = scmp.ne.s32.totalorder %s312, %s313
      %p327 = scmp.eq.s32.totalorder %s44, 1
      %p328 = por %p326, %p327
      %p330 = scmp.ne.s32.totalorder %s313, %s329
      %p331 = scmp.eq.s32.totalorder %s44, 0
      %p332 = por %p330, %p331
      %p333 = scmp.le.s32.totalorder 1, %s38
      %p334 = scmp.lt.s32.totalorder %s38, 3
      %p335 = pnand %p333, %p334
      %p336 = pneg %p335
      // Predicated region
      $region9: #{nconv_forward.7} parent=5 // pred_check
        _
      $region10: #{nconv_forward.7} parent=5 // pred_check_branch
        %338 = sbr.rel (%p335) target = $region12
      $region11: #{nconv_forward.7} parent=5 // pred_region
        %s339 = ssub.s32 %s38, 1
        // Predicated region
        $region13: #{nconv_forward.7} parent=11 // pred_check
          %p340 = pneg %p171
        $region14: #{nconv_forward.7} parent=11 // pred_check_branch
          %342 = sbr.rel (%p340) target = $region16
        $region15: #{nconv_forward.7} parent=11 // pred_region
          %s344 = ssub.s32 16, 16
          %345 = vsyncadd [#allocation9], %s344
          %s347 = sshll.u32 %s7, 4
          %s348 = int_to_ptr.vmem [resolvable:$true] %s347
          %350 = dma.vmem_to_smem %s348, 16, [#allocation7], [#allocation9]
        $region16: #{nconv_forward.7} parent=11 // pred_fallthru
          _
        // Predicated region
        $region17: #{nconv_forward.7} parent=11 // pred_check
          %p351 = pneg %p192
        $region18: #{nconv_forward.7} parent=11 // pred_check_branch
          %353 = sbr.rel (%p351) target = $region20
        $region19: #{nconv_forward.7} parent=11 // pred_region
          _
        $region20: #{nconv_forward.7} parent=11 // pred_fallthru
          _
        // Predicated region
        $region21: #{nconv_forward.7} parent=11 // pred_check
          %p354 = pneg %p213
        $region22: #{nconv_forward.7} parent=11 // pred_check_branch
          %356 = sbr.rel (%p354) target = $region24
        $region23: #{nconv_forward.7} parent=11 // pred_region
          _
        $region24: #{nconv_forward.7} parent=11 // pred_fallthru
          _
        // Predicated region
        $region25: #{nconv_forward.7} parent=11 // pred_check
          %p357 = pneg %p234
        $region26: #{nconv_forward.7} parent=11 // pred_check_branch
          %359 = sbr.rel (%p357) target = $region28
        $region27: #{nconv_forward.7} parent=11 // pred_region
          _
        $region28: #{nconv_forward.7} parent=11 // pred_fallthru
          _
        // Predicated region
        $region29: #{nconv_forward.7} parent=11 // pred_check
          %p360 = pneg %p255
        $region30: #{nconv_forward.7} parent=11 // pred_check_branch
          %362 = sbr.rel (%p360) target = $region32
        $region31: #{nconv_forward.7} parent=11 // pred_region
          _
        $region32: #{nconv_forward.7} parent=11 // pred_fallthru
          _
        // Predicated region
        $region33: #{nconv_forward.7} parent=11 // pred_check
          %p363 = pneg %p276
        $region34: #{nconv_forward.7} parent=11 // pred_check_branch
          %365 = sbr.rel (%p363) target = $region36
        $region35: #{nconv_forward.7} parent=11 // pred_region
          _
        $region36: #{nconv_forward.7} parent=11 // pred_fallthru
          _
        // Predicated region
        $region37: #{nconv_forward.7} parent=11 // pred_check
          %p366 = pneg %p297
        $region38: #{nconv_forward.7} parent=11 // pred_check_branch
          %368 = sbr.rel (%p366) target = $region40
        $region39: #{nconv_forward.7} parent=11 // pred_region
          _
        $region40: #{nconv_forward.7} parent=11 // pred_fallthru
          _
      $region12: #{nconv_forward.7} parent=5 // pred_fallthru
        _
      %p369 = scmp.lt.s32.totalorder %s38, 2
      // Predicated region
      $region41: #{nconv_forward.7} parent=5 // pred_check
        %p370 = pneg %p369
      $region42: #{nconv_forward.7} parent=5 // pred_check_branch
        %372 = sbr.rel (%p370) target = $region44
      $region43: #{nconv_forward.7} parent=5 // pred_region
        // Predicated region
        $region45: #{nconv_forward.7} parent=43 // pred_check
          %p373 = pneg %p60
        $region46: #{nconv_forward.7} parent=43 // pred_check_branch
          %375 = sbr.rel (%p373) target = $region48
        $region47: #{nconv_forward.7} parent=43 // pred_region
          %s376 = sld [smem:[#allocation5 + %s38]]
          %p377 = scmp.lt.s32.totalorder %s376, 0
          %s378 = scalar_select %p377, %s376, 0
          %s379 = scalar_lea.vmem %s3, %s378
          %s380 = sld [smem:[#allocation5 + %s38]]
        $region48: #{nconv_forward.7} parent=43 // pred_fallthru
          _
        // Predicated region
        $region49: #{nconv_forward.7} parent=43 // pred_check
          %p381 = pneg %p88
        $region50: #{nconv_forward.7} parent=43 // pred_check_branch
          %383 = sbr.rel (%p381) target = $region52
        $region51: #{nconv_forward.7} parent=43 // pred_region
          %s384 = sld [smem:[#allocation5 + %s38]]
          %s385 = smul.u32 16, %s384
          %p386 = scmp.lt.s32.totalorder %s385, 15
          %s387 = scalar_select %p386, %s385, 15
          %s388 = smul.addr %s387, 4
          %s389 = scalar_lea.vmem %s4, %s388
          %s390 = sld [smem:[#allocation5 + %s38]]
          %s391 = smul.u32 16, %s390
        $region52: #{nconv_forward.7} parent=43 // pred_fallthru
          _
        // Predicated region
        $region53: #{nconv_forward.7} parent=43 // pred_check
          %p392 = pneg %p116
        $region54: #{nconv_forward.7} parent=43 // pred_check_branch
          %394 = sbr.rel (%p392) target = $region56
        $region55: #{nconv_forward.7} parent=43 // pred_region
          %s395 = sld [smem:[#allocation4 + %s38]]
          %s396 = smul.u32 2, %s395
          %p397 = scmp.lt.s32.totalorder %s396, 1
          %s398 = scalar_select %p397, %s396, 1
          %s399 = smul.addr %s398, 4
          %s400 = scalar_lea.vmem %s5, %s399
          %s401 = sld [smem:[#allocation4 + %s38]]
          %s402 = smul.u32 2, %s401
        $region56: #{nconv_forward.7} parent=43 // pred_fallthru
          _
        // Predicated region
        $region57: #{nconv_forward.7} parent=43 // pred_check
          %p403 = pneg %p144
        $region58: #{nconv_forward.7} parent=43 // pred_check_branch
          %405 = sbr.rel (%p403) target = $region60
        $region59: #{nconv_forward.7} parent=43 // pred_region
          %s406 = sld [smem:[#allocation4 + %s38]]
          %s407 = smul.u32 2, %s406
          %p408 = scmp.lt.s32.totalorder %s407, 1
          %s409 = scalar_select %p408, %s407, 1
          %s410 = smul.addr %s409, 4
          %s411 = scalar_lea.vmem %s6, %s410
          %s412 = sld [smem:[#allocation4 + %s38]]
          %s413 = smul.u32 2, %s412
        $region60: #{nconv_forward.7} parent=43 // pred_fallthru
          _
      $region44: #{nconv_forward.7} parent=5 // pred_fallthru
        _
      %p414 = scmp.le.s32.totalorder 1, %s38
      %p415 = scmp.lt.s32.totalorder %s38, 3
      %p416 = pnand %p414, %p415
      %p417 = pneg %p416
      // Predicated region
      $region61: #{nconv_forward.7} parent=5 // pred_check
        _
      $region62: #{nconv_forward.7} parent=5 // pred_check_branch
        %419 = sbr.rel (%p416) target = $region64
      $region63: #{nconv_forward.7} parent=5 // pred_region
        %s420 = ssub.s32 %s38, 1
        // Predicated region
        $region65: #{nconv_forward.7} parent=63 // pred_check
          %p421 = pneg %p171
        $region66: #{nconv_forward.7} parent=63 // pred_check_branch
          %423 = sbr.rel (%p421) target = $region68
        $region67: #{nconv_forward.7} parent=63 // pred_region
          %424 = dma.done [#allocation9], 16
        $region68: #{nconv_forward.7} parent=63 // pred_fallthru
          _
        %425 = sfence
        %s426 = sld [smem:[#allocation5 + %s43]]
        %p427 = scmp.lt.s32.totalorder %s426, 0
        %s428 = scalar_select %p427, %s426, 0
        %s429 = scalar_lea.vmem %s3, %s428
        %p430 = pneg %p66
        %p431 = pneg %p63
        %s432 = sld [smem:[#allocation5 + %s43]]
        %s433 = smul.u32 16, %s432
        %p434 = scmp.lt.s32.totalorder %s433, 15
        %s435 = scalar_select %p434, %s433, 15
        %s436 = smul.addr %s435, 4
        %s437 = scalar_lea.vmem %s4, %s436
        %p438 = pneg %p94
        %p439 = pneg %p91
        %s440 = sld [smem:[#allocation4 + %s43]]
        %s441 = smul.u32 2, %s440
        %p442 = scmp.lt.s32.totalorder %s441, 1
        %s443 = scalar_select %p442, %s441, 1
        %s444 = smul.addr %s443, 4
        %s445 = scalar_lea.vmem %s5, %s444
        %p446 = pneg %p122
        %p447 = pneg %p119
        %s448 = sld [smem:[#allocation4 + %s43]]
        %s449 = smul.u32 2, %s448
        %p450 = scmp.lt.s32.totalorder %s449, 1
        %s451 = scalar_select %p450, %s449, 1
        %s452 = smul.addr %s451, 4
        %s453 = scalar_lea.vmem %s6, %s452
        %p454 = pneg %p150
        %p455 = pneg %p147
        %p456 = pneg %p171
        %p457 = pneg %p168
        %p458 = pneg %p192
        %p459 = pneg %p189
        %p460 = pneg %p213
        %p461 = pneg %p210
        %p462 = pneg %p234
        %p463 = pneg %p231
        %p464 = pneg %p255
        %p465 = pneg %p252
        %p466 = pneg %p276
        %p467 = pneg %p273
        %p468 = pneg %p297
        %p469 = pneg %p294
        %p470 = pneg %p325
        %p471 = pneg %p322
        %s472 = sand.u32 %s312, 1
        %s473 = scalar_lea.sflag [#allocation8], %s472
        %s474 = sand.u32 %s312, 1
        %s475 = smul.addr %s474, 16
        %s476 = scalar_lea.vmem [#allocation10], %s475
        %s477 = sld [smem:[#allocation5 + %s43]]
        %p478 = scmp.lt.s32.totalorder %s477, 0
        %s479 = scalar_select %p478, %s477, 0
        %s480 = scalar_lea.vmem %s3, %s479
        %s481 = sld [smem:[#allocation5 + %s43]]
        %s482 = sld [smem:[#allocation5 + %s43]]
        %s483 = smul.u32 16, %s482
        %p484 = scmp.lt.s32.totalorder %s483, 15
        %s485 = scalar_select %p484, %s483, 15
        %s486 = smul.addr %s485, 4
        %s487 = scalar_lea.vmem %s4, %s486
        %s488 = sld [smem:[#allocation5 + %s43]]
        %s489 = smul.u32 16, %s488
        %s490 = sld [smem:[#allocation4 + %s43]]
        %s491 = smul.u32 2, %s490
        %p492 = scmp.lt.s32.totalorder %s491, 1
        %s493 = scalar_select %p492, %s491, 1
        %s494 = smul.addr %s493, 4
        %s495 = scalar_lea.vmem %s5, %s494
        %s496 = sld [smem:[#allocation4 + %s43]]
        %s497 = smul.u32 2, %s496
        %s498 = sld [smem:[#allocation4 + %s43]]
        %s499 = smul.u32 2, %s498
        %p500 = scmp.lt.s32.totalorder %s499, 1
        %s501 = scalar_select %p500, %s499, 1
        %s502 = smul.addr %s501, 4
        %s503 = scalar_lea.vmem %s6, %s502
        %s504 = sld [smem:[#allocation4 + %s43]]
        %s505 = smul.u32 2, %s504
        %s506 = sld [smem:[#allocation4 + %s43]]
        %s507 = smul.u32 2, %s506
        %s509 = sld [smem:[#allocation6 + %s43]]
        %s510 = sand.u32 %s509, 1
        %p511 = scmp.ne.s32.totalorder %s510, 0
        // Predicated region
        $region69: #{nconv_forward.7} parent=63 // pred_check
          %p512 = pneg %p511
        $region70: #{nconv_forward.7} parent=63 // pred_check_branch
          %514 = sbr.rel (%p512) target = $region72
        $region71: #{nconv_forward.7} parent=63 // pred_region
          %515 = vst [vmem:[#allocation2] sm:$0xff] 0.0
          %516 = vst [vmem:[#allocation2 + $0x8] sm:$0xff] 0.0
        $region72: #{nconv_forward.7} parent=63 // pred_fallthru
          _
        %s517 = sand.u32 %s509, 4
        %p518 = scmp.ne.s32.totalorder %s517, 0
        // Predicated region
        $region73: #{nconv_forward.7} parent=63 // pred_check
          %p519 = pneg %p518
        $region74: #{nconv_forward.7} parent=63 // pred_check_branch
          %521 = sbr.rel (%p519) target = $region76
        $region75: #{nconv_forward.7} parent=63 // pred_region
          %s522 = sld [smem:[#allocation4 + %s43]]
          %s523 = smul.u32 %s522, 16
          %v524 = vlaneseq
          %v525 = vshrl.u32 %v524, 7
          %v526 = vadd.s32 %v525, 8
          %v527 = vstv %s523
          %v528 = vadd.s32 %v527, %v525
          %v529 = vadd.s32 %v527, %v526
          %v530 = vld [vmem:[%s480] sm:$0x1]
          %v531 = vlaneseq
          %v532 = vshrl.u32 %v531, 7
          %v533 = vsub.s32 0, %v532
          %v534 = vrot.slane %v530, %v533
          %vm535 = vcmp.eq.s32.totalorder %v528, %v534
          %vm536 = vcmp.eq.s32.totalorder %v529, %v534
          %v537 = vsel %vm535, 1, 0
          %v538 = vsel %vm536, 1, 0
          %v539 = vcvt.s32.f32 %v537
          %v540 = vcvt.s32.f32 %v538
          %v541 = vpack.c.bf16 %v540, %v539
          %v542 = vld [vmem:[#allocation2] sm:$0xff]
          %v543 = vld [vmem:[#allocation2 + $0x8] sm:$0xff]
          %v544 = vld [vmem:[%s487] sm:$0xf]
          %v545 = vld [vmem:[%s487 + $0x4] sm:$0xf]
          %v546 = vld [vmem:[%s487 + $0x8] sm:$0xf]
          %v547 = vld [vmem:[%s487 + $0xc] sm:$0xf]
          %v548 = vld [vmem:[%s487 + $0x10] sm:$0xf]
          %v549 = vld [vmem:[%s487 + $0x14] sm:$0xf]
          %v550 = vld [vmem:[%s487 + $0x18] sm:$0xf]
          %v551 = vld [vmem:[%s487 + $0x1c] sm:$0xf]
          %v552 = vld [vmem:[%s487 + $0x20] sm:$0xf]
          %v553 = vld [vmem:[%s487 + $0x24] sm:$0xf]
          %v554 = vld [vmem:[%s487 + $0x28] sm:$0xf]
          %v555 = vld [vmem:[%s487 + $0x2c] sm:$0xf]
          %v556 = vld [vmem:[%s487 + $0x30] sm:$0xf]
          %v557 = vld [vmem:[%s487 + $0x34] sm:$0xf]
          %v558 = vld [vmem:[%s487 + $0x38] sm:$0xf]
          %v559 = vld [vmem:[%s487 + $0x3c] sm:$0xf]
          %v576 = vunpack.c.l.b16 %v544
          %v577 = vunpack.c.l.b16 %v545
          %v578 = vunpack.c.l.b16 %v546
          %v579 = vunpack.c.l.b16 %v547
          %v580 = vunpack.c.l.b16 %v548
          %v581 = vunpack.c.l.b16 %v549
          %v582 = vunpack.c.l.b16 %v550
          %v583 = vunpack.c.l.b16 %v551
          %v584 = vunpack.c.l.b16 %v552
          %v585 = vunpack.c.l.b16 %v553
          %v586 = vunpack.c.l.b16 %v554
          %v587 = vunpack.c.l.b16 %v555
          %v588 = vunpack.c.l.b16 %v556
          %v589 = vunpack.c.l.b16 %v557
          %v590 = vunpack.c.l.b16 %v558
          %v591 = vunpack.c.l.b16 %v559
          %v592 = vpack.c.b16 %v577, %v576
          %v593 = vpack.c.b16 %v579, %v578
          %v594 = vpack.c.b16 %v581, %v580
          %v595 = vpack.c.b16 %v583, %v582
          %v596 = vpack.c.b16 %v585, %v584
          %v597 = vpack.c.b16 %v587, %v586
          %v598 = vpack.c.b16 %v589, %v588
          %v599 = vpack.c.b16 %v591, %v590
          %608 = vmatprep.subr.bf16.mxu0 0
          %609 = vmatpush1.bf16.msra.mxu0 %v599
          %610 = vmatprep.subr.bf16.mxu0 0
          %611 = vmatpush1.bf16.msra.mxu0 %v598
          %612 = vmatprep.subr.bf16.mxu0 0
          %613 = vmatpush1.bf16.msra.mxu0 %v597
          %614 = vmatprep.subr.bf16.mxu0 0
          %615 = vmatpush1.bf16.msra.mxu0 %v596
          %616 = vmatprep.subr.bf16.mxu0 0
          %617 = vmatpush1.bf16.msra.mxu0 %v595
          %618 = vmatprep.subr.bf16.mxu0 0
          %619 = vmatpush1.bf16.msra.mxu0 %v594
          %620 = vmatprep.subr.bf16.mxu0 0
          %621 = vmatpush1.bf16.msra.mxu0 %v593
          %622 = vmatprep.subr.bf16.mxu0 0
          %623 = vmatpush1.bf16.msra.mxu0 %v592
          %624 = vmatprep.subr.bf16.mxu0 0
          %625 = vmatpush2.bf16.msra.mxu0 0
          %626 = vmatprep.subr.bf16.mxu0 0
          %627 = vmatpush2.bf16.msra.mxu0 0
          %628 = vmatprep.subr.bf16.mxu0 0
          %629 = vmatpush2.bf16.msra.mxu0 0
          %630 = vmatprep.subr.bf16.mxu0 0
          %631 = vmatpush2.bf16.msra.mxu0 0
          %632 = vmatprep.subr.bf16.mxu0 0
          %633 = vmatpush2.bf16.msra.mxu0 0
          %634 = vmatprep.subr.bf16.mxu0 0
          %635 = vmatpush2.bf16.msra.mxu0 0
          %636 = vmatprep.subr.bf16.mxu0 0
          %637 = vmatpush2.bf16.msra.mxu0 0
          %638 = vmatprep.subr.bf16.mxu0 0
          %639 = vmatpush2.bf16.msra.mxu0 0
          %640 = vmatprep.mubr.bf16.mxu0 0
          %641 = vmatmul.mubr.bf16.gmra.mxu0 %v541
          %v642 = vpop.f32.mrf.mxu0
          %v643 = vadd.f32 0.0, %v642
          %v644 = vpop.f32.mrf.mxu0
          %v645 = vpop.f32.mrf.mxu0
          %v646 = vadd.f32 0.0, %v645
          %v647 = vpop.f32.mrf.mxu0
          %648 = vdwg.mxu0
          %v649 = vadd.f32 %v542, %v643
          %v650 = vadd.f32 %v543, %v646
          %651 = vst [vmem:[#allocation2] sm:$0xff] %v649
          %652 = vst [vmem:[#allocation2 + $0x8] sm:$0xff] %v650
        $region76: #{nconv_forward.7} parent=63 // pred_fallthru
          _
        %s653 = sand.u32 %s509, 2
        %p654 = scmp.ne.s32.totalorder %s653, 0
        // Predicated region
        $region77: #{nconv_forward.7} parent=63 // pred_check
          %p655 = pneg %p654
        $region78: #{nconv_forward.7} parent=63 // pred_check_branch
          %657 = sbr.rel (%p655) target = $region80
        $region79: #{nconv_forward.7} parent=63 // pred_region
          %s658 = sld [smem:[#allocation7]]
          %s659 = sld [smem:[#allocation7 + $0x1]]
          %v660 = vld [vmem:[%s495] sm:$0xf]
          %v661 = vld [vmem:[%s495 + $0x4] sm:$0xf]
          %v662 = vunpack.c.l.bf16 %v660
          %v663 = vunpack.c.l.bf16 %v661
          %v664 = vld [vmem:[#allocation2] sm:$0xff]
          %v665 = vld [vmem:[#allocation2 + $0x8] sm:$0xff]
          %s666 = sadd.f32 %s658, 1.0
          %v667 = vstv %s666
          %v668 = vmul.f32 %v667, %v662
          %v669 = vmul.f32 %v667, %v663
          %v670 = vadd.f32 %v664, %v668
          %v671 = vadd.f32 %v665, %v669
          %v672 = vpack.c.bf16 %v671, %v670
          %v673 = vld [vmem:[%s8] sm:$0xf]
          %v674 = vld [vmem:[%s8 + $0x4] sm:$0xf]
          %v675 = vld [vmem:[%s8 + $0x8] sm:$0xf]
          %v676 = vld [vmem:[%s8 + $0xc] sm:$0xf]
          %v677 = vld [vmem:[%s8 + $0x10] sm:$0xf]
          %v678 = vld [vmem:[%s8 + $0x14] sm:$0xf]
          %v679 = vld [vmem:[%s8 + $0x18] sm:$0xf]
          %v680 = vld [vmem:[%s8 + $0x1c] sm:$0xf]
          %v681 = vld [vmem:[%s8 + $0x20] sm:$0xf]
          %v682 = vld [vmem:[%s8 + $0x24] sm:$0xf]
          %v683 = vld [vmem:[%s8 + $0x28] sm:$0xf]
          %v684 = vld [vmem:[%s8 + $0x2c] sm:$0xf]
          %v685 = vld [vmem:[%s8 + $0x30] sm:$0xf]
          %v686 = vld [vmem:[%s8 + $0x34] sm:$0xf]
          %v687 = vld [vmem:[%s8 + $0x38] sm:$0xf]
          %v688 = vld [vmem:[%s8 + $0x3c] sm:$0xf]
          %v689 = vld [vmem:[%s9] sm:$0x1]
          %v691 = vlaneseq
          %v692 = vshrl.u32 %v691, 7
          %v693 = vsub.s32 0, %v692
          %v694 = vrot.slane %v689, %v693
          %v712 = vunpack.c.l.b16 %v673
          %v713 = vunpack.c.l.b16 %v674
          %v714 = vunpack.c.l.b16 %v675
          %v715 = vunpack.c.l.b16 %v676
          %v716 = vunpack.c.l.b16 %v677
          %v717 = vunpack.c.l.b16 %v678
          %v718 = vunpack.c.l.b16 %v679
          %v719 = vunpack.c.l.b16 %v680
          %v720 = vunpack.c.l.b16 %v681
          %v721 = vunpack.c.l.b16 %v682
          %v722 = vunpack.c.l.b16 %v683
          %v723 = vunpack.c.l.b16 %v684
          %v724 = vunpack.c.l.b16 %v685
          %v725 = vunpack.c.l.b16 %v686
          %v726 = vunpack.c.l.b16 %v687
          %v727 = vunpack.c.l.b16 %v688
          %v728 = vpack.c.b16 %v713, %v712
          %v729 = vpack.c.b16 %v715, %v714
          %v730 = vpack.c.b16 %v717, %v716
          %v731 = vpack.c.b16 %v719, %v718
          %v732 = vpack.c.b16 %v721, %v720
          %v733 = vpack.c.b16 %v723, %v722
          %v734 = vpack.c.b16 %v725, %v724
          %v735 = vpack.c.b16 %v727, %v726
          %744 = vmatprep.subr.bf16.mxu0 0
          %745 = vmatpush1.bf16.msra.mxu0 %v735
          %746 = vmatprep.subr.bf16.mxu0 0
          %747 = vmatpush1.bf16.msra.mxu0 %v734
          %748 = vmatprep.subr.bf16.mxu0 0
          %749 = vmatpush1.bf16.msra.mxu0 %v733
          %750 = vmatprep.subr.bf16.mxu0 0
          %751 = vmatpush1.bf16.msra.mxu0 %v732
          %752 = vmatprep.subr.bf16.mxu0 0
          %753 = vmatpush1.bf16.msra.mxu0 %v731
          %754 = vmatprep.subr.bf16.mxu0 0
          %755 = vmatpush1.bf16.msra.mxu0 %v730
          %756 = vmatprep.subr.bf16.mxu0 0
          %757 = vmatpush1.bf16.msra.mxu0 %v729
          %758 = vmatprep.subr.bf16.mxu0 0
          %759 = vmatpush1.bf16.msra.mxu0 %v728
          %760 = vmatprep.subr.bf16.mxu0 0
          %761 = vmatpush2.bf16.msra.mxu0 0
          %762 = vmatprep.subr.bf16.mxu0 0
          %763 = vmatpush2.bf16.msra.mxu0 0
          %764 = vmatprep.subr.bf16.mxu0 0
          %765 = vmatpush2.bf16.msra.mxu0 0
          %766 = vmatprep.subr.bf16.mxu0 0
          %767 = vmatpush2.bf16.msra.mxu0 0
          %768 = vmatprep.subr.bf16.mxu0 0
          %769 = vmatpush2.bf16.msra.mxu0 0
          %770 = vmatprep.subr.bf16.mxu0 0
          %771 = vmatpush2.bf16.msra.mxu0 0
          %772 = vmatprep.subr.bf16.mxu0 0
          %773 = vmatpush2.bf16.msra.mxu0 0
          %774 = vmatprep.subr.bf16.mxu0 0
          %775 = vmatpush2.bf16.msra.mxu0 0
          %776 = vmatprep.mubr.bf16.mxu0 0
          %777 = vmatmul.mubr.bf16.gmra.mxu0 %v672
          %v778 = vpop.f32.mrf.mxu0
          %v779 = vadd.f32 %v694, %v778
          %v780 = vpop.f32.mrf.mxu0
          %v781 = vpop.f32.mrf.mxu0
          %v782 = vadd.f32 %v694, %v781
          %v783 = vpop.f32.mrf.mxu0
          %784 = vdwg.mxu0
          %v785 = vmax.f32 %v779, 0.0
          %v786 = vmax.f32 %v782, 0.0
          %v787 = vld [vmem:[%s503] sm:$0xf]
          %v788 = vld [vmem:[%s503 + $0x4] sm:$0xf]
          %v789 = vunpack.c.l.bf16 %v787
          %v790 = vunpack.c.l.bf16 %v788
          %s791 = sadd.f32 %s659, 1.0
          %v792 = vstv %s791
          %v793 = vmul.f32 %v792, %v662
          %v794 = vmul.f32 %v792, %v663
          %v795 = vadd.f32 %v789, %v793
          %v796 = vadd.f32 %v790, %v794
          %v797 = vpack.c.bf16 %v796, %v795
          %v798 = vld [vmem:[%s10] sm:$0xf]
          %v799 = vld [vmem:[%s10 + $0x4] sm:$0xf]
          %v800 = vld [vmem:[%s10 + $0x8] sm:$0xf]
          %v801 = vld [vmem:[%s10 + $0xc] sm:$0xf]
          %v802 = vld [vmem:[%s10 + $0x10] sm:$0xf]
          %v803 = vld [vmem:[%s10 + $0x14] sm:$0xf]
          %v804 = vld [vmem:[%s10 + $0x18] sm:$0xf]
          %v805 = vld [vmem:[%s10 + $0x1c] sm:$0xf]
          %v806 = vld [vmem:[%s10 + $0x20] sm:$0xf]
          %v807 = vld [vmem:[%s10 + $0x24] sm:$0xf]
          %v808 = vld [vmem:[%s10 + $0x28] sm:$0xf]
          %v809 = vld [vmem:[%s10 + $0x2c] sm:$0xf]
          %v810 = vld [vmem:[%s10 + $0x30] sm:$0xf]
          %v811 = vld [vmem:[%s10 + $0x34] sm:$0xf]
          %v812 = vld [vmem:[%s10 + $0x38] sm:$0xf]
          %v813 = vld [vmem:[%s10 + $0x3c] sm:$0xf]
          %v814 = vld [vmem:[%s11] sm:$0x1]
          %v816 = vlaneseq
          %v817 = vshrl.u32 %v816, 7
          %v818 = vsub.s32 0, %v817
          %v819 = vrot.slane %v814, %v818
          %v837 = vunpack.c.l.b16 %v798
          %v838 = vunpack.c.l.b16 %v799
          %v839 = vunpack.c.l.b16 %v800
          %v840 = vunpack.c.l.b16 %v801
          %v841 = vunpack.c.l.b16 %v802
          %v842 = vunpack.c.l.b16 %v803
          %v843 = vunpack.c.l.b16 %v804
          %v844 = vunpack.c.l.b16 %v805
          %v845 = vunpack.c.l.b16 %v806
          %v846 = vunpack.c.l.b16 %v807
          %v847 = vunpack.c.l.b16 %v808
          %v848 = vunpack.c.l.b16 %v809
          %v849 = vunpack.c.l.b16 %v810
          %v850 = vunpack.c.l.b16 %v811
          %v851 = vunpack.c.l.b16 %v812
          %v852 = vunpack.c.l.b16 %v813
          %v853 = vpack.c.b16 %v838, %v837
          %v854 = vpack.c.b16 %v840, %v839
          %v855 = vpack.c.b16 %v842, %v841
          %v856 = vpack.c.b16 %v844, %v843
          %v857 = vpack.c.b16 %v846, %v845
          %v858 = vpack.c.b16 %v848, %v847
          %v859 = vpack.c.b16 %v850, %v849
          %v860 = vpack.c.b16 %v852, %v851
          %869 = vmatprep.subr.bf16.mxu0 0
          %870 = vmatpush1.bf16.msra.mxu0 %v860
          %871 = vmatprep.subr.bf16.mxu0 0
          %872 = vmatpush1.bf16.msra.mxu0 %v859
          %873 = vmatprep.subr.bf16.mxu0 0
          %874 = vmatpush1.bf16.msra.mxu0 %v858
          %875 = vmatprep.subr.bf16.mxu0 0
          %876 = vmatpush1.bf16.msra.mxu0 %v857
          %877 = vmatprep.subr.bf16.mxu0 0
          %878 = vmatpush1.bf16.msra.mxu0 %v856
          %879 = vmatprep.subr.bf16.mxu0 0
          %880 = vmatpush1.bf16.msra.mxu0 %v855
          %881 = vmatprep.subr.bf16.mxu0 0
          %882 = vmatpush1.bf16.msra.mxu0 %v854
          %883 = vmatprep.subr.bf16.mxu0 0
          %884 = vmatpush1.bf16.msra.mxu0 %v853
          %885 = vmatprep.subr.bf16.mxu0 0
          %886 = vmatpush2.bf16.msra.mxu0 0
          %887 = vmatprep.subr.bf16.mxu0 0
          %888 = vmatpush2.bf16.msra.mxu0 0
          %889 = vmatprep.subr.bf16.mxu0 0
          %890 = vmatpush2.bf16.msra.mxu0 0
          %891 = vmatprep.subr.bf16.mxu0 0
          %892 = vmatpush2.bf16.msra.mxu0 0
          %893 = vmatprep.subr.bf16.mxu0 0
          %894 = vmatpush2.bf16.msra.mxu0 0
          %895 = vmatprep.subr.bf16.mxu0 0
          %896 = vmatpush2.bf16.msra.mxu0 0
          %897 = vmatprep.subr.bf16.mxu0 0
          %898 = vmatpush2.bf16.msra.mxu0 0
          %899 = vmatprep.subr.bf16.mxu0 0
          %900 = vmatpush2.bf16.msra.mxu0 0
          %901 = vmatprep.mubr.bf16.mxu0 0
          %902 = vmatmul.mubr.bf16.gmra.mxu0 %v797
          %v903 = vpop.f32.mrf.mxu0
          %v904 = vadd.f32 %v819, %v903
          %v905 = vpop.f32.mrf.mxu0
          %v906 = vpop.f32.mrf.mxu0
          %v907 = vadd.f32 %v819, %v906
          %v908 = vpop.f32.mrf.mxu0
          %909 = vdwg.mxu0
          %v910 = vmax.f32 %v904, 0.0
          %v911 = vmax.f32 %v907, 0.0
          %v912 = vpack.c.bf16 %v786, %v785
          %v913 = vpack.c.bf16 %v911, %v910
          %v914 = vld [vmem:[%s12] sm:$0xf]
          %v915 = vld [vmem:[%s12 + $0x4] sm:$0xf]
          %v916 = vld [vmem:[%s12 + $0x8] sm:$0xf]
          %v917 = vld [vmem:[%s12 + $0xc] sm:$0xf]
          %v918 = vld [vmem:[%s12 + $0x10] sm:$0xf]
          %v919 = vld [vmem:[%s12 + $0x14] sm:$0xf]
          %v920 = vld [vmem:[%s12 + $0x18] sm:$0xf]
          %v921 = vld [vmem:[%s12 + $0x1c] sm:$0xf]
          %v922 = vld [vmem:[%s12 + $0x20] sm:$0xf]
          %v923 = vld [vmem:[%s12 + $0x24] sm:$0xf]
          %v924 = vld [vmem:[%s12 + $0x28] sm:$0xf]
          %v925 = vld [vmem:[%s12 + $0x2c] sm:$0xf]
          %v926 = vld [vmem:[%s12 + $0x30] sm:$0xf]
          %v927 = vld [vmem:[%s12 + $0x34] sm:$0xf]
          %v928 = vld [vmem:[%s12 + $0x38] sm:$0xf]
          %v929 = vld [vmem:[%s12 + $0x3c] sm:$0xf]
          %v930 = vld [vmem:[%s12 + $0x40] sm:$0xf]
          %v931 = vld [vmem:[%s12 + $0x44] sm:$0xf]
          %v932 = vld [vmem:[%s12 + $0x48] sm:$0xf]
          %v933 = vld [vmem:[%s12 + $0x4c] sm:$0xf]
          %v934 = vld [vmem:[%s12 + $0x50] sm:$0xf]
          %v935 = vld [vmem:[%s12 + $0x54] sm:$0xf]
          %v936 = vld [vmem:[%s12 + $0x58] sm:$0xf]
          %v937 = vld [vmem:[%s12 + $0x5c] sm:$0xf]
          %v938 = vld [vmem:[%s12 + $0x60] sm:$0xf]
          %v939 = vld [vmem:[%s12 + $0x64] sm:$0xf]
          %v940 = vld [vmem:[%s12 + $0x68] sm:$0xf]
          %v941 = vld [vmem:[%s12 + $0x6c] sm:$0xf]
          %v942 = vld [vmem:[%s12 + $0x70] sm:$0xf]
          %v943 = vld [vmem:[%s12 + $0x74] sm:$0xf]
          %v944 = vld [vmem:[%s12 + $0x78] sm:$0xf]
          %v945 = vld [vmem:[%s12 + $0x7c] sm:$0xf]
          %v946 = vld [vmem:[%s13] sm:$0x1]
          %v948 = vlaneseq
          %v949 = vshrl.u32 %v948, 7
          %v950 = vsub.s32 0, %v949
          %v951 = vrot.slane %v946, %v950
          %v985 = vunpack.c.l.b16 %v914
          %v986 = vunpack.c.l.b16 %v915
          %v987 = vunpack.c.l.b16 %v916
          %v988 = vunpack.c.l.b16 %v917
          %v989 = vunpack.c.l.b16 %v918
          %v990 = vunpack.c.l.b16 %v919
          %v991 = vunpack.c.l.b16 %v920
          %v992 = vunpack.c.l.b16 %v921
          %v993 = vunpack.c.l.b16 %v922
          %v994 = vunpack.c.l.b16 %v923
          %v995 = vunpack.c.l.b16 %v924
          %v996 = vunpack.c.l.b16 %v925
          %v997 = vunpack.c.l.b16 %v926
          %v998 = vunpack.c.l.b16 %v927
          %v999 = vunpack.c.l.b16 %v928
          %v1000 = vunpack.c.l.b16 %v929
          %v1001 = vunpack.c.l.b16 %v930
          %v1002 = vunpack.c.l.b16 %v931
          %v1003 = vunpack.c.l.b16 %v932
          %v1004 = vunpack.c.l.b16 %v933
          %v1005 = vunpack.c.l.b16 %v934
          %v1006 = vunpack.c.l.b16 %v935
          %v1007 = vunpack.c.l.b16 %v936
          %v1008 = vunpack.c.l.b16 %v937
          %v1009 = vunpack.c.l.b16 %v938
          %v1010 = vunpack.c.l.b16 %v939
          %v1011 = vunpack.c.l.b16 %v940
          %v1012 = vunpack.c.l.b16 %v941
          %v1013 = vunpack.c.l.b16 %v942
          %v1014 = vunpack.c.l.b16 %v943
          %v1015 = vunpack.c.l.b16 %v944
          %v1016 = vunpack.c.l.b16 %v945
          %v1017 = vpack.c.b16 %v986, %v985
          %v1018 = vpack.c.b16 %v988, %v987
          %v1019 = vpack.c.b16 %v990, %v989
          %v1020 = vpack.c.b16 %v992, %v991
          %v1021 = vpack.c.b16 %v994, %v993
          %v1022 = vpack.c.b16 %v996, %v995
          %v1023 = vpack.c.b16 %v998, %v997
          %v1024 = vpack.c.b16 %v1000, %v999
          %v1025 = vpack.c.b16 %v1002, %v1001
          %v1026 = vpack.c.b16 %v1004, %v1003
          %v1027 = vpack.c.b16 %v1006, %v1005
          %v1028 = vpack.c.b16 %v1008, %v1007
          %v1029 = vpack.c.b16 %v1010, %v1009
          %v1030 = vpack.c.b16 %v1012, %v1011
          %v1031 = vpack.c.b16 %v1014, %v1013
          %v1032 = vpack.c.b16 %v1016, %v1015
          %1049 = vmatprep.subr.bf16.mxu0 0
          %1050 = vmatpush1.bf16.msra.mxu0 %v1024
          %1051 = vmatprep.subr.bf16.mxu0 0
          %1052 = vmatpush1.bf16.msra.mxu0 %v1023
          %1053 = vmatprep.subr.bf16.mxu0 0
          %1054 = vmatpush1.bf16.msra.mxu0 %v1022
          %1055 = vmatprep.subr.bf16.mxu0 0
          %1056 = vmatpush1.bf16.msra.mxu0 %v1021
          %1057 = vmatprep.subr.bf16.mxu0 0
          %1058 = vmatpush1.bf16.msra.mxu0 %v1020
          %1059 = vmatprep.subr.bf16.mxu0 0
          %1060 = vmatpush1.bf16.msra.mxu0 %v1019
          %1061 = vmatprep.subr.bf16.mxu0 0
          %1062 = vmatpush1.bf16.msra.mxu0 %v1018
          %1063 = vmatprep.subr.bf16.mxu0 0
          %1064 = vmatpush1.bf16.msra.mxu0 %v1017
          %1065 = vmatprep.subr.bf16.mxu0 0
          %1066 = vmatpush2.bf16.msra.mxu0 %v1032
          %1067 = vmatprep.subr.bf16.mxu0 0
          %1068 = vmatpush2.bf16.msra.mxu0 %v1031
          %1069 = vmatprep.subr.bf16.mxu0 0
          %1070 = vmatpush2.bf16.msra.mxu0 %v1030
          %1071 = vmatprep.subr.bf16.mxu0 0
          %1072 = vmatpush2.bf16.msra.mxu0 %v1029
          %1073 = vmatprep.subr.bf16.mxu0 0
          %1074 = vmatpush2.bf16.msra.mxu0 %v1028
          %1075 = vmatprep.subr.bf16.mxu0 0
          %1076 = vmatpush2.bf16.msra.mxu0 %v1027
          %1077 = vmatprep.subr.bf16.mxu0 0
          %1078 = vmatpush2.bf16.msra.mxu0 %v1026
          %1079 = vmatprep.subr.bf16.mxu0 0
          %1080 = vmatpush2.bf16.msra.mxu0 %v1025
          %1081 = vmatprep.mubr.bf16.mxu0 %v913
          %1082 = vmatmul.mubr.bf16.gmra.mxu0 %v912
          %v1083 = vpop.f32.mrf.mxu0
          %v1084 = vadd.f32 %v951, %v1083
          %v1085 = vpop.f32.mrf.mxu0
          %v1086 = vpop.f32.mrf.mxu0
          %v1087 = vadd.f32 %v951, %v1086
          %v1088 = vpop.f32.mrf.mxu0
          %1089 = vdwg.mxu0
          %1090 = vst [vmem:[%s476] sm:$0xff] %v1084
          %1091 = vst [vmem:[%s476 + $0x8] sm:$0xff] %v1087
        $region80: #{nconv_forward.7} parent=63 // pred_fallthru
          _
        %s1092 = sand.u32 %s312, 1
        %s1093 = scalar_lea.sflag [#allocation8], %s1092
        %s1094 = sand.u32 %s312, 1
        %s1095 = smul.addr %s1094, 16
        %s1096 = scalar_lea.vmem [#allocation10], %s1095
        // Predicated region
        $region81: #{nconv_forward.7} parent=63 // pred_check
          %p1097 = pneg %p322
        $region82: #{nconv_forward.7} parent=63 // pred_check_branch
          %1099 = sbr.rel (%p1097) target = $region84
        $region83: #{nconv_forward.7} parent=63 // pred_region
          %s1100 = sld [smem:[#allocation4 + %s43]]
          %s1101 = smul.u32 2, %s1100
          %s1103 = ssub.s32 256, 256
          %1104 = vsyncadd %s1093, %s1103
          %s1105 = smul.addr %s1101, 128
          %s1106 = scalar_lea.hbm %s14, %s1105
          %s1107 = sshll.u32 %s1096, 4
          %s1108 = int_to_ptr.vmem [resolvable:$true] %s1107
          %1113 = dma.vmem_to_hbm [thread:$0]  %s1108, 256, %s1106, %s1093, 128, 128, 8
        $region84: #{nconv_forward.7} parent=63 // pred_fallthru
          _
      $region64: #{nconv_forward.7} parent=5 // pred_fallthru
        _
      %p1114 = scmp.le.s32.totalorder 2, %s38
      // Predicated region
      $region85: #{nconv_forward.7} parent=5 // pred_check
        %p1115 = pneg %p1114
      $region86: #{nconv_forward.7} parent=5 // pred_check_branch
        %1117 = sbr.rel (%p1115) target = $region88
      $region87: #{nconv_forward.7} parent=5 // pred_region
        %s1118 = ssub.s32 %s38, 2
        // Predicated region
        $region89: #{nconv_forward.7} parent=87 // pred_check
          %p1119 = pneg %p328
        $region90: #{nconv_forward.7} parent=87 // pred_check_branch
          %1121 = sbr.rel (%p1119) target = $region92
        $region91: #{nconv_forward.7} parent=87 // pred_region
          %s1122 = sand.u32 %s313, 1
          %s1123 = scalar_lea.sflag [#allocation8], %s1122
          %s1124 = sand.u32 %s313, 1
          %s1125 = smul.addr %s1124, 16
          %s1126 = scalar_lea.vmem [#allocation10], %s1125
          %1127 = dma.done %s1123, 256
        $region92: #{nconv_forward.7} parent=87 // pred_fallthru
          _
      $region88: #{nconv_forward.7} parent=5 // pred_fallthru
        _
    $region6: #{nconv_forward.7} parent=1 // loop_footer
      %s42 = sadd.s32 1, %s38
    $region7: #{nconv_forward.7} parent=1 // loop_footer_branch
      %37 = sbr.rel target = $region3
    $region8: #{nconv_forward.7} parent=1 // loop_exit
      _
    %1128 = vsyncpa [#allocation8], 1
    %s1129 = scalar_lea.sflag [#allocation8], 1
    %1130 = vsyncpa %s1129, 1
    %1131 = vsyncpa [#allocation9], 1
    %s1132 = scalar_lea.sflag [#allocation9], 1
    %1133 = vsyncpa %s1132, 1

</llo_original>
